<compile_context>
chip_gen: v7x
topology: tpu7x:2x2x1
jax: 0.10.0
libtpu: 0.0.40
codegen_flags: <defaults>
</compile_context>

<pallas_src>
import jax
import jax.numpy as jnp
from jax.experimental import pallas as pl
from jax.experimental.pallas import tpu as pltpu

F_IMG = 32        # image branch feature width
F_PT = 32         # point branch feature width
F_OUT = 8         # fused output width
P_FEAT = 4        # point feature count (x, y, z, intensity)
SLAB_ROWS = max(F_IMG, F_PT)
SLAB_LANES = 128  # lane-dense parameter slab / output width


# ------------------------------------------------------------ slab layout ---

def _slab_offsets(C):
    """Column offsets of each packed parameter inside the (32, 128) slab."""
    o = {}
    o["w_img"] = (0, C)                                     # (F_IMG, C)
    o["b_img"] = (C, C + 1)                                 # (F_IMG, 1)
    o["w_pt"] = (C + 1, C + 1 + P_FEAT)                     # (F_PT, 4)
    o["b_pt"] = (C + 1 + P_FEAT, C + 2 + P_FEAT)            # (F_PT, 1)
    o["w_fi"] = (C + 2 + P_FEAT, C + 2 + P_FEAT + F_OUT)    # (F_IMG, F_OUT)
    o["w_fp"] = (o["w_fi"][1], o["w_fi"][1] + F_OUT)        # (F_PT, F_OUT)
    o["b_f"] = (o["w_fp"][1], o["w_fp"][1] + F_OUT)         # (1, F_OUT), row 0
    return o


def pack_weight_slab(params, C):
    off = _slab_offsets(C)
    assert off["b_f"][1] <= SLAB_LANES
    slab = jnp.zeros((SLAB_ROWS, SLAB_LANES), jnp.float32)
    slab = slab.at[:F_IMG, off["w_img"][0]:off["w_img"][1]].set(params["w_img"])
    slab = slab.at[:F_IMG, off["b_img"][0]:off["b_img"][1]].set(params["b_img"])
    slab = slab.at[:F_PT, off["w_pt"][0]:off["w_pt"][1]].set(params["w_pt"])
    slab = slab.at[:F_PT, off["b_pt"][0]:off["b_pt"][1]].set(params["b_pt"])
    slab = slab.at[:F_IMG, off["w_fi"][0]:off["w_fi"][1]].set(params["w_fuse_img"])
    slab = slab.at[:F_PT, off["w_fp"][0]:off["w_fp"][1]].set(params["w_fuse_pt"])
    slab = slab.at[0:1, off["b_f"][0]:off["b_f"][1]].set(params["b_fuse"])
    return slab


# ---------------------------------------------------------------- kernel ----

def make_fused_kernel(Bb, C, HW, N, H_px, W_px):
    """Kernel processing Bb batch items per grid step. H_px/W_px are baked-in
    Python float constants (static img_shape)."""
    off = _slab_offsets(C)
    inv_hw = 1.0 / float(HW)

    def kernel(l2i_ref,        # SMEM (B*16,) f32 — flattened lidar2img
               x_ref,          # (Bb, C, HW)
               pts_ref,        # (Bb, 4, N)
               slab_ref,       # (SLAB_ROWS, SLAB_LANES) packed weights
               o_ref):         # (1, Bb, SLAB_LANES)
        blk = pl.program_id(0)

        slab = slab_ref[...]
        w_img = slab[0:F_IMG, off["w_img"][0]:off["w_img"][1]]   # (F_IMG, C)
        b_img = slab[0:F_IMG, off["b_img"][0]:off["b_img"][1]]   # (F_IMG, 1)
        w_pt = slab[0:F_PT, off["w_pt"][0]:off["w_pt"][1]]       # (F_PT, 4)
        b_pt = slab[0:F_PT, off["b_pt"][0]:off["b_pt"][1]]       # (F_PT, 1)
        w_fi = slab[0:F_IMG, off["w_fi"][0]:off["w_fi"][1]]      # (F_IMG, F_OUT)
        w_fp = slab[0:F_PT, off["w_fp"][0]:off["w_fp"][1]]       # (F_PT, F_OUT)
        b_f = slab[0:1, off["b_f"][0]:off["b_f"][1]]             # (1, F_OUT)

        # Hoisted broadcasts (once per grid step, NOT per batch item).
        w_img_cols = [jnp.broadcast_to(w_img[:, c:c + 1], (F_IMG, HW))
                      for c in range(C)]
        b_img_b = jnp.broadcast_to(b_img, (F_IMG, HW))
        w_pt_cols = [jnp.broadcast_to(w_pt[:, c:c + 1], (F_PT, N))
                     for c in range(P_FEAT)]
        b_pt_b = jnp.broadcast_to(b_pt, (F_PT, N))

        outs = []
        for bb in range(Bb):                       # unrolled, Bb is tiny
            b = blk * Bb + bb
            base = b * 16                          # row-major (b, i, j) offset

            # ---- image branch: 1x1 conv + ReLU + global mean pool ----------
            x = x_ref[bb]                          # (C, HW), HW on lanes
            feat = w_img_cols[0] * x[0:1, :]
            for c in range(1, C):
                feat = feat + w_img_cols[c] * x[c:c + 1, :]
            feat = jnp.maximum(feat + b_img_b, 0.0)            # (F_IMG, HW)
            img_pool = jnp.sum(feat, axis=1, keepdims=True) * inv_hw  # (F_IMG,1)

            # ---- point branch: project (SMEM scalar FMAs), mask, MLP, max ---
            pts = pts_ref[bb]                      # (4, N), N on lanes
            proj = []
            for i in range(3):                     # rows: u, v, depth
                r = l2i_ref[base + i * 4 + 3] + l2i_ref[base + i * 4 + 0] * pts[0:1, :]
                r = r + l2i_ref[base + i * 4 + 1] * pts[1:2, :]
                r = r + l2i_ref[base + i * 4 + 2] * pts[2:3, :]
                proj.append(r)                     # (1, N)
            u, v, depth = proj
            safe_d = jnp.maximum(depth, 1e-5)
            uu = u / safe_d
            vv = v / safe_d
            valid = ((uu >= 0.0) & (uu < W_px) &
                     (vv >= 0.0) & (vv < H_px) & (depth > 0.0))        # (1, N)

            h = w_pt_cols[0] * pts[0:1, :]
            for c in range(1, P_FEAT):
                h = h + w_pt_cols[c] * pts[c:c + 1, :]
            h = jnp.maximum(h + b_pt_b, 0.0)                           # (F_PT, N)
            # zero-fill masked max (matches reference; post-ReLU values >= 0)
            h = jnp.where(valid, h, 0.0)
            pt_pool = jnp.max(h, axis=1, keepdims=True)                # (F_PT, 1)

            # ---- fusion head: elementwise mul + sublane reduce (no MXU) -----
            fused = (jnp.sum(w_fi * img_pool, axis=0, keepdims=True)
                     + jnp.sum(w_fp * pt_pool, axis=0, keepdims=True)
                     + b_f)                                            # (1, F_OUT)
            outs.append(fused)

        fused_all = jnp.concatenate(outs, axis=0) if Bb > 1 else outs[0]
        # Lane-dense single writeback: pad to 128 lanes, one unmasked store.
        pad = jnp.zeros((Bb, SLAB_LANES - F_OUT), jnp.float32)
        o_ref[0] = jnp.concatenate([fused_all, pad], axis=1)           # (Bb, 128)

    return kernel


# ---------------------------------------------------------------- wrapper ---

def _default_num_blocks(B):
    # v7x has 2 TensorCores per chip -> give each TC one block.
    # On single-TC v5e/v6e a single grid step (full batch fold) is best.
    try:
        kind = jax.devices()[0].device_kind.lower()
    except Exception:
        kind = ""
    if B > 0 and B % 2 == 0 and ("v7" in kind or "7x" in kind):
        return 2
    return 1


def helper_model_forward(image, lidar2img, img_shape, points, params,
                         *, num_blocks=None):
    B, C, H, W = image.shape
    N = points.shape[1]
    HW = H * W

    if num_blocks is None:
        num_blocks = _default_num_blocks(B)
    if B % num_blocks != 0:
        num_blocks = 1
    Bb = B // num_blocks

    # img_shape is static (Python ints) -> baked into the kernel.
    H_px = float(img_shape[0])
    W_px = float(img_shape[1])

    x = image.reshape(B, C, HW)                       # free contiguous reshape
    pts_t = jnp.transpose(points, (0, 2, 1))          # tiny, N lane-dense
    l2i_flat = lidar2img.reshape(B * 16)              # -> SMEM scalars
    slab = pack_weight_slab(params, C)                # one lane-dense DMA

    kernel = make_fused_kernel(Bb, C, HW, N, H_px, W_px)

    out3 = pl.pallas_call(
        kernel,
        out_shape=jax.ShapeDtypeStruct((num_blocks, Bb, SLAB_LANES), jnp.float32),
        grid=(num_blocks,),
        in_specs=[
            pl.BlockSpec(memory_space=pltpu.MemorySpace.SMEM),         # lidar2img
            pl.BlockSpec((Bb, C, HW), lambda blk: (blk, 0, 0)),        # image
            pl.BlockSpec((Bb, 4, N), lambda blk: (blk, 0, 0)),         # points^T
            pl.BlockSpec((SLAB_ROWS, SLAB_LANES), lambda blk: (0, 0)), # weights
        ],
        out_specs=pl.BlockSpec((1, Bb, SLAB_LANES), lambda blk: (blk, 0, 0)),
        compiler_params=pltpu.CompilerParams(
            dimension_semantics=("parallel",)),        # megacore split on v7x
    )(l2i_flat, x, pts_t, slab)

    return out3.reshape(B, SLAB_LANES)[:, :F_OUT]      # (B, F_OUT)


# --------------------------------------------------------------- reference --

def reference_forward(image, lidar2img, img_shape, points, params):
    """Pure-JAX reference used for a correctness check."""
    B, C, H, W = image.shape
    x = image.reshape(B, C, H * W)
    feat = jnp.einsum('fc,bcp->bfp', params["w_img"], x)
    feat = jnp.maximum(feat + params["b_img"][None], 0.0)
    img_pool = feat.mean(axis=2)                                  # (B, F_IMG)

    pts = jnp.transpose(points, (0, 2, 1))                        # (B, 4, N)
    xyz1 = jnp.concatenate([pts[:, :3], jnp.ones_like(pts[:, :1])], axis=1)
    proj = jnp.einsum('bij,bjn->bin', lidar2img, xyz1)
    u, v, d = proj[:, 0], proj[:, 1], proj[:, 2]
    sd = jnp.maximum(d, 1e-5)
    uu, vv = u / sd, v / sd
    h_px = float(img_shape[0])
    w_px = float(img_shape[1])
    valid = (uu >= 0) & (uu < w_px) & (vv >= 0) & (vv < h_px) & (d > 0)

    h = jnp.einsum('fc,bcn->bfn', params["w_pt"], pts)
    h = jnp.maximum(h + params["b_pt"][None], 0.0)
    h = jnp.where(valid[:, None, :], h, 0.0)
    pt_pool = h.max(axis=2)                                       # (B, F_PT)

    return (img_pool @ params["w_fuse_img"]
            + pt_pool @ params["w_fuse_pt"]
            + params["b_fuse"])                                   # (B, F_OUT)


def make_params(key):
    k1, k2, k3, k4, k5, k6, k7 = jax.random.split(key, 7)
    return {
        "w_img": 0.1 * jax.random.normal(k1, (F_IMG, 4), jnp.float32),
        "b_img": 0.1 * jax.random.normal(k2, (F_IMG, 1), jnp.float32),
        "w_pt": 0.1 * jax.random.normal(k3, (F_PT, P_FEAT), jnp.float32),
        "b_pt": 0.1 * jax.random.normal(k4, (F_PT, 1), jnp.float32),
        "w_fuse_img": 0.1 * jax.random.normal(k5, (F_IMG, F_OUT), jnp.float32),
        "w_fuse_pt": 0.1 * jax.random.normal(k6, (F_PT, F_OUT), jnp.float32),
        "b_fuse": 0.1 * jax.random.normal(k7, (1, F_OUT), jnp.float32),
    }


if __name__ == "__main__":
    key = jax.random.PRNGKey(0)
    kp, ki, kpt = jax.random.split(key, 3)

    B, C, H, W, N = 2, 4, 16, 16, 128

    params = make_params(kp)

    image = jax.random.normal(ki, (B, C, H, W), jnp.float32)

    # simple camera-like projection matrix for every batch item
    base = jnp.array(
        [[8.0, 0.0, 8.0, 0.0],
         [0.0, 8.0, 8.0, 0.0],
         [0.0, 0.0, 1.0, 0.0],
         [0.0, 0.0, 0.0, 1.0]], jnp.float32)
    lidar2img = jnp.broadcast_to(base, (B, 4, 4))

    img_shape = (H, W)   # static (H, W) — baked into the kernel

    points = jax.random.uniform(kpt, (B, N, P_FEAT), jnp.float32,
                                minval=-1.0, maxval=1.0)
    points = points.at[..., 2].set(jnp.abs(points[..., 2]) + 0.2)  # z > 0

    fwd = jax.jit(helper_model_forward, static_argnums=(2,))
    out = fwd(image, lidar2img, img_shape, points, params)
    jax.block_until_ready(out)

    assert out.shape == (B, F_OUT) and out.dtype == jnp.float32

    ref = reference_forward(image, lidar2img, img_shape, points, params)
    assert bool(jnp.allclose(out, ref, rtol=1e-4, atol=1e-4)), \
        "Pallas kernel disagrees with pure-JAX reference"

    print("KERNEL_OK")
</pallas_src>

<mosaic_0001>
module attributes {stable_mosaic.version = 11 : i64} {
  func.func @kernel(%arg0: i32, %arg1: memref<32xf32, #tpu.memory_space<smem>>, %arg2: memref<2x4x256xf32, #tpu.memory_space<vmem>>, %arg3: memref<2x4x128xf32, #tpu.memory_space<vmem>>, %arg4: memref<32x128xf32, #tpu.memory_space<vmem>>, %arg5: memref<1x2x128xf32, #tpu.memory_space<vmem>>) attributes {dimension_semantics = [#tpu.dimension_semantics<parallel>], iteration_bounds = array<i64: 1>, scalar_prefetch = 0 : i64, scratch_operands = 0 : i64, tpu.core_type = #tpu.core_type<tc>, window_params = [{transform_indices = @transform_0, window_bounds = array<i64: 32>}, {transform_indices = @transform_1, window_bounds = array<i64: 2, 4, 256>}, {transform_indices = @transform_2, window_bounds = array<i64: 2, 4, 128>}, {pipeline_mode = #tpu.pipeline_mode<synchronous>, transform_indices = @transform_3, window_bounds = array<i64: 32, 128>}, {transform_indices = @transform_4, window_bounds = array<i64: 1, 2, 128>}]} {
    %c0 = arith.constant 0 : index
    %c0_0 = arith.constant 0 : index
    %0 = vector.load %arg4[%c0, %c0_0] : memref<32x128xf32, #tpu.memory_space<vmem>>, vector<32x128xf32>
    %1 = vector.extract_strided_slice %0 {offsets = [0, 0], sizes = [32, 4], strides = [1, 1]} : vector<32x128xf32> to vector<32x4xf32>
    %2 = vector.extract_strided_slice %0 {offsets = [0, 4], sizes = [32, 1], strides = [1, 1]} : vector<32x128xf32> to vector<32x1xf32>
    %3 = vector.extract_strided_slice %0 {offsets = [0, 5], sizes = [32, 4], strides = [1, 1]} : vector<32x128xf32> to vector<32x4xf32>
    %4 = vector.extract_strided_slice %0 {offsets = [0, 9], sizes = [32, 1], strides = [1, 1]} : vector<32x128xf32> to vector<32x1xf32>
    %5 = vector.extract_strided_slice %0 {offsets = [0, 10], sizes = [32, 8], strides = [1, 1]} : vector<32x128xf32> to vector<32x8xf32>
    %6 = vector.extract_strided_slice %0 {offsets = [0, 18], sizes = [32, 8], strides = [1, 1]} : vector<32x128xf32> to vector<32x8xf32>
    %7 = vector.extract_strided_slice %0 {offsets = [0, 26], sizes = [1, 8], strides = [1, 1]} : vector<32x128xf32> to vector<1x8xf32>
    %8 = vector.extract_strided_slice %1 {offsets = [0, 0], sizes = [32, 1], strides = [1, 1]} : vector<32x4xf32> to vector<32x1xf32>
    %9 = vector.shape_cast %8 : vector<32x1xf32> to vector<32x1xf32>
    %10 = vector.broadcast %9 : vector<32x1xf32> to vector<32x256xf32>
    %11 = vector.extract_strided_slice %1 {offsets = [0, 1], sizes = [32, 1], strides = [1, 1]} : vector<32x4xf32> to vector<32x1xf32>
    %12 = vector.shape_cast %11 : vector<32x1xf32> to vector<32x1xf32>
    %13 = vector.broadcast %12 : vector<32x1xf32> to vector<32x256xf32>
    %14 = vector.extract_strided_slice %1 {offsets = [0, 2], sizes = [32, 1], strides = [1, 1]} : vector<32x4xf32> to vector<32x1xf32>
    %15 = vector.shape_cast %14 : vector<32x1xf32> to vector<32x1xf32>
    %16 = vector.broadcast %15 : vector<32x1xf32> to vector<32x256xf32>
    %17 = vector.extract_strided_slice %1 {offsets = [0, 3], sizes = [32, 1], strides = [1, 1]} : vector<32x4xf32> to vector<32x1xf32>
    %18 = vector.shape_cast %17 : vector<32x1xf32> to vector<32x1xf32>
    %19 = vector.broadcast %18 : vector<32x1xf32> to vector<32x256xf32>
    %20 = vector.shape_cast %2 : vector<32x1xf32> to vector<32x1xf32>
    %21 = vector.broadcast %20 : vector<32x1xf32> to vector<32x256xf32>
    %22 = vector.extract_strided_slice %3 {offsets = [0, 0], sizes = [32, 1], strides = [1, 1]} : vector<32x4xf32> to vector<32x1xf32>
    %23 = vector.shape_cast %22 : vector<32x1xf32> to vector<32x1xf32>
    %24 = vector.broadcast %23 : vector<32x1xf32> to vector<32x128xf32>
    %25 = vector.extract_strided_slice %3 {offsets = [0, 1], sizes = [32, 1], strides = [1, 1]} : vector<32x4xf32> to vector<32x1xf32>
    %26 = vector.shape_cast %25 : vector<32x1xf32> to vector<32x1xf32>
    %27 = vector.broadcast %26 : vector<32x1xf32> to vector<32x128xf32>
    %28 = vector.extract_strided_slice %3 {offsets = [0, 2], sizes = [32, 1], strides = [1, 1]} : vector<32x4xf32> to vector<32x1xf32>
    %29 = vector.shape_cast %28 : vector<32x1xf32> to vector<32x1xf32>
    %30 = vector.broadcast %29 : vector<32x1xf32> to vector<32x128xf32>
    %31 = vector.extract_strided_slice %3 {offsets = [0, 3], sizes = [32, 1], strides = [1, 1]} : vector<32x4xf32> to vector<32x1xf32>
    %32 = vector.shape_cast %31 : vector<32x1xf32> to vector<32x1xf32>
    %33 = vector.broadcast %32 : vector<32x1xf32> to vector<32x128xf32>
    %34 = vector.shape_cast %4 : vector<32x1xf32> to vector<32x1xf32>
    %35 = vector.broadcast %34 : vector<32x1xf32> to vector<32x128xf32>
    %c2_i32 = arith.constant 2 : i32
    %36 = arith.muli %arg0, %c2_i32 : i32
    %c0_i32 = arith.constant 0 : i32
    %37 = arith.addi %36, %c0_i32 : i32
    %c16_i32 = arith.constant 16 : i32
    %38 = arith.muli %37, %c16_i32 : i32
    %c0_1 = arith.constant 0 : index
    %c0_2 = arith.constant 0 : index
    %c0_3 = arith.constant 0 : index
    %39 = vector.load %arg2[%c0_1, %c0_2, %c0_3] : memref<2x4x256xf32, #tpu.memory_space<vmem>>, vector<1x4x256xf32>
    %40 = vector.shape_cast %39 : vector<1x4x256xf32> to vector<4x256xf32>
    %41 = vector.extract_strided_slice %40 {offsets = [0, 0], sizes = [1, 256], strides = [1, 1]} : vector<4x256xf32> to vector<1x256xf32>
    %42 = vector.broadcast %41 : vector<1x256xf32> to vector<32x256xf32>
    %43 = arith.mulf %10, %42 : vector<32x256xf32>
    %44 = vector.extract_strided_slice %40 {offsets = [1, 0], sizes = [1, 256], strides = [1, 1]} : vector<4x256xf32> to vector<1x256xf32>
    %45 = vector.broadcast %44 : vector<1x256xf32> to vector<32x256xf32>
    %46 = arith.mulf %13, %45 : vector<32x256xf32>
    %47 = arith.addf %43, %46 : vector<32x256xf32>
    %48 = vector.extract_strided_slice %40 {offsets = [2, 0], sizes = [1, 256], strides = [1, 1]} : vector<4x256xf32> to vector<1x256xf32>
    %49 = vector.broadcast %48 : vector<1x256xf32> to vector<32x256xf32>
    %50 = arith.mulf %16, %49 : vector<32x256xf32>
    %51 = arith.addf %47, %50 : vector<32x256xf32>
    %52 = vector.extract_strided_slice %40 {offsets = [3, 0], sizes = [1, 256], strides = [1, 1]} : vector<4x256xf32> to vector<1x256xf32>
    %53 = vector.broadcast %52 : vector<1x256xf32> to vector<32x256xf32>
    %54 = arith.mulf %19, %53 : vector<32x256xf32>
    %55 = arith.addf %51, %54 : vector<32x256xf32>
    %56 = arith.addf %55, %21 : vector<32x256xf32>
    %cst = arith.constant 0.000000e+00 : f32
    %57 = vector.broadcast %cst : f32 to vector<32x256xf32>
    %58 = arith.maximumf %56, %57 : vector<32x256xf32>
    %cst_4 = arith.constant dense<0.000000e+00> : vector<32xf32>
    %59 = vector.multi_reduction <add>, %58, %cst_4 [1] : vector<32x256xf32> to vector<32xf32>
    %60 = vector.shape_cast %59 : vector<32xf32> to vector<32x1xf32>
    %cst_5 = arith.constant 3.906250e-03 : f32
    %61 = vector.broadcast %cst_5 : f32 to vector<32x1xf32>
    %62 = arith.mulf %60, %61 : vector<32x1xf32>
    %c0_6 = arith.constant 0 : index
    %c0_7 = arith.constant 0 : index
    %c0_8 = arith.constant 0 : index
    %63 = vector.load %arg3[%c0_6, %c0_7, %c0_8] : memref<2x4x128xf32, #tpu.memory_space<vmem>>, vector<1x4x128xf32>
    %64 = vector.shape_cast %63 : vector<1x4x128xf32> to vector<4x128xf32>
    %c0_i32_9 = arith.constant 0 : i32
    %65 = arith.addi %38, %c0_i32_9 : i32
    %c3_i32 = arith.constant 3 : i32
    %66 = arith.addi %65, %c3_i32 : i32
    %67 = arith.index_cast %66 : i32 to index
    %68 = memref.load %arg1[%67] : memref<32xf32, #tpu.memory_space<smem>>
    %c0_i32_10 = arith.constant 0 : i32
    %69 = arith.addi %38, %c0_i32_10 : i32
    %c0_i32_11 = arith.constant 0 : i32
    %70 = arith.addi %69, %c0_i32_11 : i32
    %71 = arith.index_cast %70 : i32 to index
    %72 = memref.load %arg1[%71] : memref<32xf32, #tpu.memory_space<smem>>
    %73 = vector.extract_strided_slice %64 {offsets = [0, 0], sizes = [1, 128], strides = [1, 1]} : vector<4x128xf32> to vector<1x128xf32>
    %74 = vector.broadcast %72 : f32 to vector<1x128xf32>
    %75 = arith.mulf %74, %73 : vector<1x128xf32>
    %76 = vector.broadcast %68 : f32 to vector<1x128xf32>
    %77 = arith.addf %76, %75 : vector<1x128xf32>
    %c0_i32_12 = arith.constant 0 : i32
    %78 = arith.addi %38, %c0_i32_12 : i32
    %c1_i32 = arith.constant 1 : i32
    %79 = arith.addi %78, %c1_i32 : i32
    %80 = arith.index_cast %79 : i32 to index
    %81 = memref.load %arg1[%80] : memref<32xf32, #tpu.memory_space<smem>>
    %82 = vector.extract_strided_slice %64 {offsets = [1, 0], sizes = [1, 128], strides = [1, 1]} : vector<4x128xf32> to vector<1x128xf32>
    %83 = vector.broadcast %81 : f32 to vector<1x128xf32>
    %84 = arith.mulf %83, %82 : vector<1x128xf32>
    %85 = arith.addf %77, %84 : vector<1x128xf32>
    %c0_i32_13 = arith.constant 0 : i32
    %86 = arith.addi %38, %c0_i32_13 : i32
    %c2_i32_14 = arith.constant 2 : i32
    %87 = arith.addi %86, %c2_i32_14 : i32
    %88 = arith.index_cast %87 : i32 to index
    %89 = memref.load %arg1[%88] : memref<32xf32, #tpu.memory_space<smem>>
    %90 = vector.extract_strided_slice %64 {offsets = [2, 0], sizes = [1, 128], strides = [1, 1]} : vector<4x128xf32> to vector<1x128xf32>
    %91 = vector.broadcast %89 : f32 to vector<1x128xf32>
    %92 = arith.mulf %91, %90 : vector<1x128xf32>
    %93 = arith.addf %85, %92 : vector<1x128xf32>
    %c4_i32 = arith.constant 4 : i32
    %94 = arith.addi %38, %c4_i32 : i32
    %c3_i32_15 = arith.constant 3 : i32
    %95 = arith.addi %94, %c3_i32_15 : i32
    %96 = arith.index_cast %95 : i32 to index
    %97 = memref.load %arg1[%96] : memref<32xf32, #tpu.memory_space<smem>>
    %c4_i32_16 = arith.constant 4 : i32
    %98 = arith.addi %38, %c4_i32_16 : i32
    %c0_i32_17 = arith.constant 0 : i32
    %99 = arith.addi %98, %c0_i32_17 : i32
    %100 = arith.index_cast %99 : i32 to index
    %101 = memref.load %arg1[%100] : memref<32xf32, #tpu.memory_space<smem>>
    %102 = vector.extract_strided_slice %64 {offsets = [0, 0], sizes = [1, 128], strides = [1, 1]} : vector<4x128xf32> to vector<1x128xf32>
    %103 = vector.broadcast %101 : f32 to vector<1x128xf32>
    %104 = arith.mulf %103, %102 : vector<1x128xf32>
    %105 = vector.broadcast %97 : f32 to vector<1x128xf32>
    %106 = arith.addf %105, %104 : vector<1x128xf32>
    %c4_i32_18 = arith.constant 4 : i32
    %107 = arith.addi %38, %c4_i32_18 : i32
    %c1_i32_19 = arith.constant 1 : i32
    %108 = arith.addi %107, %c1_i32_19 : i32
    %109 = arith.index_cast %108 : i32 to index
    %110 = memref.load %arg1[%109] : memref<32xf32, #tpu.memory_space<smem>>
    %111 = vector.extract_strided_slice %64 {offsets = [1, 0], sizes = [1, 128], strides = [1, 1]} : vector<4x128xf32> to vector<1x128xf32>
    %112 = vector.broadcast %110 : f32 to vector<1x128xf32>
    %113 = arith.mulf %112, %111 : vector<1x128xf32>
    %114 = arith.addf %106, %113 : vector<1x128xf32>
    %c4_i32_20 = arith.constant 4 : i32
    %115 = arith.addi %38, %c4_i32_20 : i32
    %c2_i32_21 = arith.constant 2 : i32
    %116 = arith.addi %115, %c2_i32_21 : i32
    %117 = arith.index_cast %116 : i32 to index
    %118 = memref.load %arg1[%117] : memref<32xf32, #tpu.memory_space<smem>>
    %119 = vector.extract_strided_slice %64 {offsets = [2, 0], sizes = [1, 128], strides = [1, 1]} : vector<4x128xf32> to vector<1x128xf32>
    %120 = vector.broadcast %118 : f32 to vector<1x128xf32>
    %121 = arith.mulf %120, %119 : vector<1x128xf32>
    %122 = arith.addf %114, %121 : vector<1x128xf32>
    %c8_i32 = arith.constant 8 : i32
    %123 = arith.addi %38, %c8_i32 : i32
    %c3_i32_22 = arith.constant 3 : i32
    %124 = arith.addi %123, %c3_i32_22 : i32
    %125 = arith.index_cast %124 : i32 to index
    %126 = memref.load %arg1[%125] : memref<32xf32, #tpu.memory_space<smem>>
    %c8_i32_23 = arith.constant 8 : i32
    %127 = arith.addi %38, %c8_i32_23 : i32
    %c0_i32_24 = arith.constant 0 : i32
    %128 = arith.addi %127, %c0_i32_24 : i32
    %129 = arith.index_cast %128 : i32 to index
    %130 = memref.load %arg1[%129] : memref<32xf32, #tpu.memory_space<smem>>
    %131 = vector.extract_strided_slice %64 {offsets = [0, 0], sizes = [1, 128], strides = [1, 1]} : vector<4x128xf32> to vector<1x128xf32>
    %132 = vector.broadcast %130 : f32 to vector<1x128xf32>
    %133 = arith.mulf %132, %131 : vector<1x128xf32>
    %134 = vector.broadcast %126 : f32 to vector<1x128xf32>
    %135 = arith.addf %134, %133 : vector<1x128xf32>
    %c8_i32_25 = arith.constant 8 : i32
    %136 = arith.addi %38, %c8_i32_25 : i32
    %c1_i32_26 = arith.constant 1 : i32
    %137 = arith.addi %136, %c1_i32_26 : i32
    %138 = arith.index_cast %137 : i32 to index
    %139 = memref.load %arg1[%138] : memref<32xf32, #tpu.memory_space<smem>>
    %140 = vector.extract_strided_slice %64 {offsets = [1, 0], sizes = [1, 128], strides = [1, 1]} : vector<4x128xf32> to vector<1x128xf32>
    %141 = vector.broadcast %139 : f32 to vector<1x128xf32>
    %142 = arith.mulf %141, %140 : vector<1x128xf32>
    %143 = arith.addf %135, %142 : vector<1x128xf32>
    %c8_i32_27 = arith.constant 8 : i32
    %144 = arith.addi %38, %c8_i32_27 : i32
    %c2_i32_28 = arith.constant 2 : i32
    %145 = arith.addi %144, %c2_i32_28 : i32
    %146 = arith.index_cast %145 : i32 to index
    %147 = memref.load %arg1[%146] : memref<32xf32, #tpu.memory_space<smem>>
    %148 = vector.extract_strided_slice %64 {offsets = [2, 0], sizes = [1, 128], strides = [1, 1]} : vector<4x128xf32> to vector<1x128xf32>
    %149 = vector.broadcast %147 : f32 to vector<1x128xf32>
    %150 = arith.mulf %149, %148 : vector<1x128xf32>
    %151 = arith.addf %143, %150 : vector<1x128xf32>
    %cst_29 = arith.constant 9.99999974E-6 : f32
    %152 = vector.broadcast %cst_29 : f32 to vector<1x128xf32>
    %153 = arith.maximumf %151, %152 : vector<1x128xf32>
    %154 = arith.divf %93, %153 : vector<1x128xf32>
    %155 = arith.divf %122, %153 : vector<1x128xf32>
    %cst_30 = arith.constant 0.000000e+00 : f32
    %156 = vector.broadcast %cst_30 : f32 to vector<1x128xf32>
    %157 = arith.cmpf oge, %154, %156 : vector<1x128xf32>
    %cst_31 = arith.constant 1.600000e+01 : f32
    %158 = vector.broadcast %cst_31 : f32 to vector<1x128xf32>
    %159 = arith.cmpf olt, %154, %158 : vector<1x128xf32>
    %160 = arith.andi %157, %159 : vector<1x128xi1>
    %cst_32 = arith.constant 0.000000e+00 : f32
    %161 = vector.broadcast %cst_32 : f32 to vector<1x128xf32>
    %162 = arith.cmpf oge, %155, %161 : vector<1x128xf32>
    %163 = arith.andi %160, %162 : vector<1x128xi1>
    %cst_33 = arith.constant 1.600000e+01 : f32
    %164 = vector.broadcast %cst_33 : f32 to vector<1x128xf32>
    %165 = arith.cmpf olt, %155, %164 : vector<1x128xf32>
    %166 = arith.andi %163, %165 : vector<1x128xi1>
    %cst_34 = arith.constant 0.000000e+00 : f32
    %167 = vector.broadcast %cst_34 : f32 to vector<1x128xf32>
    %168 = arith.cmpf ogt, %151, %167 : vector<1x128xf32>
    %169 = arith.andi %166, %168 : vector<1x128xi1>
    %170 = vector.extract_strided_slice %64 {offsets = [0, 0], sizes = [1, 128], strides = [1, 1]} : vector<4x128xf32> to vector<1x128xf32>
    %171 = vector.broadcast %170 : vector<1x128xf32> to vector<32x128xf32>
    %172 = arith.mulf %24, %171 : vector<32x128xf32>
    %173 = vector.extract_strided_slice %64 {offsets = [1, 0], sizes = [1, 128], strides = [1, 1]} : vector<4x128xf32> to vector<1x128xf32>
    %174 = vector.broadcast %173 : vector<1x128xf32> to vector<32x128xf32>
    %175 = arith.mulf %27, %174 : vector<32x128xf32>
    %176 = arith.addf %172, %175 : vector<32x128xf32>
    %177 = vector.extract_strided_slice %64 {offsets = [2, 0], sizes = [1, 128], strides = [1, 1]} : vector<4x128xf32> to vector<1x128xf32>
    %178 = vector.broadcast %177 : vector<1x128xf32> to vector<32x128xf32>
    %179 = arith.mulf %30, %178 : vector<32x128xf32>
    %180 = arith.addf %176, %179 : vector<32x128xf32>
    %181 = vector.extract_strided_slice %64 {offsets = [3, 0], sizes = [1, 128], strides = [1, 1]} : vector<4x128xf32> to vector<1x128xf32>
    %182 = vector.broadcast %181 : vector<1x128xf32> to vector<32x128xf32>
    %183 = arith.mulf %33, %182 : vector<32x128xf32>
    %184 = arith.addf %180, %183 : vector<32x128xf32>
    %185 = arith.addf %184, %35 : vector<32x128xf32>
    %cst_35 = arith.constant 0.000000e+00 : f32
    %186 = vector.broadcast %cst_35 : f32 to vector<32x128xf32>
    %187 = arith.maximumf %185, %186 : vector<32x128xf32>
    %cst_36 = arith.constant 0.000000e+00 : f32
    %188 = vector.shape_cast %169 : vector<1x128xi1> to vector<1x128xi1>
    %189 = vector.broadcast %188 : vector<1x128xi1> to vector<32x128xi1>
    %190 = vector.broadcast %cst_36 : f32 to vector<32x128xf32>
    %191 = arith.select %189, %187, %190 : vector<32x128xi1>, vector<32x128xf32>
    %cst_37 = arith.constant dense<0xFF800000> : vector<32xf32>
    %192 = vector.multi_reduction <maximumf>, %191, %cst_37 [1] : vector<32x128xf32> to vector<32xf32>
    %193 = vector.shape_cast %192 : vector<32xf32> to vector<32x1xf32>
    %194 = vector.broadcast %62 : vector<32x1xf32> to vector<32x8xf32>
    %195 = arith.mulf %5, %194 : vector<32x8xf32>
    %cst_38 = arith.constant dense<0.000000e+00> : vector<8xf32>
    %196 = vector.multi_reduction <add>, %195, %cst_38 [0] : vector<32x8xf32> to vector<8xf32>
    %197 = vector.shape_cast %196 : vector<8xf32> to vector<1x8xf32>
    %198 = vector.broadcast %193 : vector<32x1xf32> to vector<32x8xf32>
    %199 = arith.mulf %6, %198 : vector<32x8xf32>
    %cst_39 = arith.constant dense<0.000000e+00> : vector<8xf32>
    %200 = vector.multi_reduction <add>, %199, %cst_39 [0] : vector<32x8xf32> to vector<8xf32>
    %201 = vector.shape_cast %200 : vector<8xf32> to vector<1x8xf32>
    %202 = arith.addf %197, %201 : vector<1x8xf32>
    %203 = arith.addf %202, %7 : vector<1x8xf32>
    %c2_i32_40 = arith.constant 2 : i32
    %204 = arith.muli %arg0, %c2_i32_40 : i32
    %c1_i32_41 = arith.constant 1 : i32
    %205 = arith.addi %204, %c1_i32_41 : i32
    %c16_i32_42 = arith.constant 16 : i32
    %206 = arith.muli %205, %c16_i32_42 : i32
    %c1 = arith.constant 1 : index
    %c0_43 = arith.constant 0 : index
    %c0_44 = arith.constant 0 : index
    %207 = vector.load %arg2[%c1, %c0_43, %c0_44] : memref<2x4x256xf32, #tpu.memory_space<vmem>>, vector<1x4x256xf32>
    %208 = vector.shape_cast %207 : vector<1x4x256xf32> to vector<4x256xf32>
    %209 = vector.extract_strided_slice %208 {offsets = [0, 0], sizes = [1, 256], strides = [1, 1]} : vector<4x256xf32> to vector<1x256xf32>
    %210 = vector.broadcast %209 : vector<1x256xf32> to vector<32x256xf32>
    %211 = arith.mulf %10, %210 : vector<32x256xf32>
    %212 = vector.extract_strided_slice %208 {offsets = [1, 0], sizes = [1, 256], strides = [1, 1]} : vector<4x256xf32> to vector<1x256xf32>
    %213 = vector.broadcast %212 : vector<1x256xf32> to vector<32x256xf32>
    %214 = arith.mulf %13, %213 : vector<32x256xf32>
    %215 = arith.addf %211, %214 : vector<32x256xf32>
    %216 = vector.extract_strided_slice %208 {offsets = [2, 0], sizes = [1, 256], strides = [1, 1]} : vector<4x256xf32> to vector<1x256xf32>
    %217 = vector.broadcast %216 : vector<1x256xf32> to vector<32x256xf32>
    %218 = arith.mulf %16, %217 : vector<32x256xf32>
    %219 = arith.addf %215, %218 : vector<32x256xf32>
    %220 = vector.extract_strided_slice %208 {offsets = [3, 0], sizes = [1, 256], strides = [1, 1]} : vector<4x256xf32> to vector<1x256xf32>
    %221 = vector.broadcast %220 : vector<1x256xf32> to vector<32x256xf32>
    %222 = arith.mulf %19, %221 : vector<32x256xf32>
    %223 = arith.addf %219, %222 : vector<32x256xf32>
    %224 = arith.addf %223, %21 : vector<32x256xf32>
    %cst_45 = arith.constant 0.000000e+00 : f32
    %225 = vector.broadcast %cst_45 : f32 to vector<32x256xf32>
    %226 = arith.maximumf %224, %225 : vector<32x256xf32>
    %cst_46 = arith.constant dense<0.000000e+00> : vector<32xf32>
    %227 = vector.multi_reduction <add>, %226, %cst_46 [1] : vector<32x256xf32> to vector<32xf32>
    %228 = vector.shape_cast %227 : vector<32xf32> to vector<32x1xf32>
    %cst_47 = arith.constant 3.906250e-03 : f32
    %229 = vector.broadcast %cst_47 : f32 to vector<32x1xf32>
    %230 = arith.mulf %228, %229 : vector<32x1xf32>
    %c1_48 = arith.constant 1 : index
    %c0_49 = arith.constant 0 : index
    %c0_50 = arith.constant 0 : index
    %231 = vector.load %arg3[%c1_48, %c0_49, %c0_50] : memref<2x4x128xf32, #tpu.memory_space<vmem>>, vector<1x4x128xf32>
    %232 = vector.shape_cast %231 : vector<1x4x128xf32> to vector<4x128xf32>
    %c0_i32_51 = arith.constant 0 : i32
    %233 = arith.addi %206, %c0_i32_51 : i32
    %c3_i32_52 = arith.constant 3 : i32
    %234 = arith.addi %233, %c3_i32_52 : i32
    %235 = arith.index_cast %234 : i32 to index
    %236 = memref.load %arg1[%235] : memref<32xf32, #tpu.memory_space<smem>>
    %c0_i32_53 = arith.constant 0 : i32
    %237 = arith.addi %206, %c0_i32_53 : i32
    %c0_i32_54 = arith.constant 0 : i32
    %238 = arith.addi %237, %c0_i32_54 : i32
    %239 = arith.index_cast %238 : i32 to index
    %240 = memref.load %arg1[%239] : memref<32xf32, #tpu.memory_space<smem>>
    %241 = vector.extract_strided_slice %232 {offsets = [0, 0], sizes = [1, 128], strides = [1, 1]} : vector<4x128xf32> to vector<1x128xf32>
    %242 = vector.broadcast %240 : f32 to vector<1x128xf32>
    %243 = arith.mulf %242, %241 : vector<1x128xf32>
    %244 = vector.broadcast %236 : f32 to vector<1x128xf32>
    %245 = arith.addf %244, %243 : vector<1x128xf32>
    %c0_i32_55 = arith.constant 0 : i32
    %246 = arith.addi %206, %c0_i32_55 : i32
    %c1_i32_56 = arith.constant 1 : i32
    %247 = arith.addi %246, %c1_i32_56 : i32
    %248 = arith.index_cast %247 : i32 to index
    %249 = memref.load %arg1[%248] : memref<32xf32, #tpu.memory_space<smem>>
    %250 = vector.extract_strided_slice %232 {offsets = [1, 0], sizes = [1, 128], strides = [1, 1]} : vector<4x128xf32> to vector<1x128xf32>
    %251 = vector.broadcast %249 : f32 to vector<1x128xf32>
    %252 = arith.mulf %251, %250 : vector<1x128xf32>
    %253 = arith.addf %245, %252 : vector<1x128xf32>
    %c0_i32_57 = arith.constant 0 : i32
    %254 = arith.addi %206, %c0_i32_57 : i32
    %c2_i32_58 = arith.constant 2 : i32
    %255 = arith.addi %254, %c2_i32_58 : i32
    %256 = arith.index_cast %255 : i32 to index
    %257 = memref.load %arg1[%256] : memref<32xf32, #tpu.memory_space<smem>>
    %258 = vector.extract_strided_slice %232 {offsets = [2, 0], sizes = [1, 128], strides = [1, 1]} : vector<4x128xf32> to vector<1x128xf32>
    %259 = vector.broadcast %257 : f32 to vector<1x128xf32>
    %260 = arith.mulf %259, %258 : vector<1x128xf32>
    %261 = arith.addf %253, %260 : vector<1x128xf32>
    %c4_i32_59 = arith.constant 4 : i32
    %262 = arith.addi %206, %c4_i32_59 : i32
    %c3_i32_60 = arith.constant 3 : i32
    %263 = arith.addi %262, %c3_i32_60 : i32
    %264 = arith.index_cast %263 : i32 to index
    %265 = memref.load %arg1[%264] : memref<32xf32, #tpu.memory_space<smem>>
    %c4_i32_61 = arith.constant 4 : i32
    %266 = arith.addi %206, %c4_i32_61 : i32
    %c0_i32_62 = arith.constant 0 : i32
    %267 = arith.addi %266, %c0_i32_62 : i32
    %268 = arith.index_cast %267 : i32 to index
    %269 = memref.load %arg1[%268] : memref<32xf32, #tpu.memory_space<smem>>
    %270 = vector.extract_strided_slice %232 {offsets = [0, 0], sizes = [1, 128], strides = [1, 1]} : vector<4x128xf32> to vector<1x128xf32>
    %271 = vector.broadcast %269 : f32 to vector<1x128xf32>
    %272 = arith.mulf %271, %270 : vector<1x128xf32>
    %273 = vector.broadcast %265 : f32 to vector<1x128xf32>
    %274 = arith.addf %273, %272 : vector<1x128xf32>
    %c4_i32_63 = arith.constant 4 : i32
    %275 = arith.addi %206, %c4_i32_63 : i32
    %c1_i32_64 = arith.constant 1 : i32
    %276 = arith.addi %275, %c1_i32_64 : i32
    %277 = arith.index_cast %276 : i32 to index
    %278 = memref.load %arg1[%277] : memref<32xf32, #tpu.memory_space<smem>>
    %279 = vector.extract_strided_slice %232 {offsets = [1, 0], sizes = [1, 128], strides = [1, 1]} : vector<4x128xf32> to vector<1x128xf32>
    %280 = vector.broadcast %278 : f32 to vector<1x128xf32>
    %281 = arith.mulf %280, %279 : vector<1x128xf32>
    %282 = arith.addf %274, %281 : vector<1x128xf32>
    %c4_i32_65 = arith.constant 4 : i32
    %283 = arith.addi %206, %c4_i32_65 : i32
    %c2_i32_66 = arith.constant 2 : i32
    %284 = arith.addi %283, %c2_i32_66 : i32
    %285 = arith.index_cast %284 : i32 to index
    %286 = memref.load %arg1[%285] : memref<32xf32, #tpu.memory_space<smem>>
    %287 = vector.extract_strided_slice %232 {offsets = [2, 0], sizes = [1, 128], strides = [1, 1]} : vector<4x128xf32> to vector<1x128xf32>
    %288 = vector.broadcast %286 : f32 to vector<1x128xf32>
    %289 = arith.mulf %288, %287 : vector<1x128xf32>
    %290 = arith.addf %282, %289 : vector<1x128xf32>
    %c8_i32_67 = arith.constant 8 : i32
    %291 = arith.addi %206, %c8_i32_67 : i32
    %c3_i32_68 = arith.constant 3 : i32
    %292 = arith.addi %291, %c3_i32_68 : i32
    %293 = arith.index_cast %292 : i32 to index
    %294 = memref.load %arg1[%293] : memref<32xf32, #tpu.memory_space<smem>>
    %c8_i32_69 = arith.constant 8 : i32
    %295 = arith.addi %206, %c8_i32_69 : i32
    %c0_i32_70 = arith.constant 0 : i32
    %296 = arith.addi %295, %c0_i32_70 : i32
    %297 = arith.index_cast %296 : i32 to index
    %298 = memref.load %arg1[%297] : memref<32xf32, #tpu.memory_space<smem>>
    %299 = vector.extract_strided_slice %232 {offsets = [0, 0], sizes = [1, 128], strides = [1, 1]} : vector<4x128xf32> to vector<1x128xf32>
    %300 = vector.broadcast %298 : f32 to vector<1x128xf32>
    %301 = arith.mulf %300, %299 : vector<1x128xf32>
    %302 = vector.broadcast %294 : f32 to vector<1x128xf32>
    %303 = arith.addf %302, %301 : vector<1x128xf32>
    %c8_i32_71 = arith.constant 8 : i32
    %304 = arith.addi %206, %c8_i32_71 : i32
    %c1_i32_72 = arith.constant 1 : i32
    %305 = arith.addi %304, %c1_i32_72 : i32
    %306 = arith.index_cast %305 : i32 to index
    %307 = memref.load %arg1[%306] : memref<32xf32, #tpu.memory_space<smem>>
    %308 = vector.extract_strided_slice %232 {offsets = [1, 0], sizes = [1, 128], strides = [1, 1]} : vector<4x128xf32> to vector<1x128xf32>
    %309 = vector.broadcast %307 : f32 to vector<1x128xf32>
    %310 = arith.mulf %309, %308 : vector<1x128xf32>
    %311 = arith.addf %303, %310 : vector<1x128xf32>
    %c8_i32_73 = arith.constant 8 : i32
    %312 = arith.addi %206, %c8_i32_73 : i32
    %c2_i32_74 = arith.constant 2 : i32
    %313 = arith.addi %312, %c2_i32_74 : i32
    %314 = arith.index_cast %313 : i32 to index
    %315 = memref.load %arg1[%314] : memref<32xf32, #tpu.memory_space<smem>>
    %316 = vector.extract_strided_slice %232 {offsets = [2, 0], sizes = [1, 128], strides = [1, 1]} : vector<4x128xf32> to vector<1x128xf32>
    %317 = vector.broadcast %315 : f32 to vector<1x128xf32>
    %318 = arith.mulf %317, %316 : vector<1x128xf32>
    %319 = arith.addf %311, %318 : vector<1x128xf32>
    %cst_75 = arith.constant 9.99999974E-6 : f32
    %320 = vector.broadcast %cst_75 : f32 to vector<1x128xf32>
    %321 = arith.maximumf %319, %320 : vector<1x128xf32>
    %322 = arith.divf %261, %321 : vector<1x128xf32>
    %323 = arith.divf %290, %321 : vector<1x128xf32>
    %cst_76 = arith.constant 0.000000e+00 : f32
    %324 = vector.broadcast %cst_76 : f32 to vector<1x128xf32>
    %325 = arith.cmpf oge, %322, %324 : vector<1x128xf32>
    %cst_77 = arith.constant 1.600000e+01 : f32
    %326 = vector.broadcast %cst_77 : f32 to vector<1x128xf32>
    %327 = arith.cmpf olt, %322, %326 : vector<1x128xf32>
    %328 = arith.andi %325, %327 : vector<1x128xi1>
    %cst_78 = arith.constant 0.000000e+00 : f32
    %329 = vector.broadcast %cst_78 : f32 to vector<1x128xf32>
    %330 = arith.cmpf oge, %323, %329 : vector<1x128xf32>
    %331 = arith.andi %328, %330 : vector<1x128xi1>
    %cst_79 = arith.constant 1.600000e+01 : f32
    %332 = vector.broadcast %cst_79 : f32 to vector<1x128xf32>
    %333 = arith.cmpf olt, %323, %332 : vector<1x128xf32>
    %334 = arith.andi %331, %333 : vector<1x128xi1>
    %cst_80 = arith.constant 0.000000e+00 : f32
    %335 = vector.broadcast %cst_80 : f32 to vector<1x128xf32>
    %336 = arith.cmpf ogt, %319, %335 : vector<1x128xf32>
    %337 = arith.andi %334, %336 : vector<1x128xi1>
    %338 = vector.extract_strided_slice %232 {offsets = [0, 0], sizes = [1, 128], strides = [1, 1]} : vector<4x128xf32> to vector<1x128xf32>
    %339 = vector.broadcast %338 : vector<1x128xf32> to vector<32x128xf32>
    %340 = arith.mulf %24, %339 : vector<32x128xf32>
    %341 = vector.extract_strided_slice %232 {offsets = [1, 0], sizes = [1, 128], strides = [1, 1]} : vector<4x128xf32> to vector<1x128xf32>
    %342 = vector.broadcast %341 : vector<1x128xf32> to vector<32x128xf32>
    %343 = arith.mulf %27, %342 : vector<32x128xf32>
    %344 = arith.addf %340, %343 : vector<32x128xf32>
    %345 = vector.extract_strided_slice %232 {offsets = [2, 0], sizes = [1, 128], strides = [1, 1]} : vector<4x128xf32> to vector<1x128xf32>
    %346 = vector.broadcast %345 : vector<1x128xf32> to vector<32x128xf32>
    %347 = arith.mulf %30, %346 : vector<32x128xf32>
    %348 = arith.addf %344, %347 : vector<32x128xf32>
    %349 = vector.extract_strided_slice %232 {offsets = [3, 0], sizes = [1, 128], strides = [1, 1]} : vector<4x128xf32> to vector<1x128xf32>
    %350 = vector.broadcast %349 : vector<1x128xf32> to vector<32x128xf32>
    %351 = arith.mulf %33, %350 : vector<32x128xf32>
    %352 = arith.addf %348, %351 : vector<32x128xf32>
    %353 = arith.addf %352, %35 : vector<32x128xf32>
    %cst_81 = arith.constant 0.000000e+00 : f32
    %354 = vector.broadcast %cst_81 : f32 to vector<32x128xf32>
    %355 = arith.maximumf %353, %354 : vector<32x128xf32>
    %cst_82 = arith.constant 0.000000e+00 : f32
    %356 = vector.shape_cast %337 : vector<1x128xi1> to vector<1x128xi1>
    %357 = vector.broadcast %356 : vector<1x128xi1> to vector<32x128xi1>
    %358 = vector.broadcast %cst_82 : f32 to vector<32x128xf32>
    %359 = arith.select %357, %355, %358 : vector<32x128xi1>, vector<32x128xf32>
    %cst_83 = arith.constant dense<0xFF800000> : vector<32xf32>
    %360 = vector.multi_reduction <maximumf>, %359, %cst_83 [1] : vector<32x128xf32> to vector<32xf32>
    %361 = vector.shape_cast %360 : vector<32xf32> to vector<32x1xf32>
    %362 = vector.broadcast %230 : vector<32x1xf32> to vector<32x8xf32>
    %363 = arith.mulf %5, %362 : vector<32x8xf32>
    %cst_84 = arith.constant dense<0.000000e+00> : vector<8xf32>
    %364 = vector.multi_reduction <add>, %363, %cst_84 [0] : vector<32x8xf32> to vector<8xf32>
    %365 = vector.shape_cast %364 : vector<8xf32> to vector<1x8xf32>
    %366 = vector.broadcast %361 : vector<32x1xf32> to vector<32x8xf32>
    %367 = arith.mulf %6, %366 : vector<32x8xf32>
    %cst_85 = arith.constant dense<0.000000e+00> : vector<8xf32>
    %368 = vector.multi_reduction <add>, %367, %cst_85 [0] : vector<32x8xf32> to vector<8xf32>
    %369 = vector.shape_cast %368 : vector<8xf32> to vector<1x8xf32>
    %370 = arith.addf %365, %369 : vector<1x8xf32>
    %371 = arith.addf %370, %7 : vector<1x8xf32>
    %372 = tpu.concatenate %203, %371 in 0 : vector<1x8xf32>, vector<1x8xf32> -> vector<2x8xf32>
    %cst_86 = arith.constant 0.000000e+00 : f32
    %373 = vector.broadcast %cst_86 : f32 to vector<2x120xf32>
    %374 = tpu.concatenate %372, %373 in 1 : vector<2x8xf32>, vector<2x120xf32> -> vector<2x128xf32>
    %c0_87 = arith.constant 0 : index
    %c0_88 = arith.constant 0 : index
    %c0_89 = arith.constant 0 : index
    %375 = vector.load %arg5[%c0_87, %c0_88, %c0_89] : memref<1x2x128xf32, #tpu.memory_space<vmem>>, vector<1x2x128xf32>
    %376 = vector.shape_cast %375 : vector<1x2x128xf32> to vector<2x128xf32>
    %377 = vector.shape_cast %374 : vector<2x128xf32> to vector<1x2x128xf32>
    tpu.vector_store %arg5[%c0_87, %c0_88, %c0_89], %377 {strides = array<i32>} : memref<1x2x128xf32, #tpu.memory_space<vmem>>, vector<1x2x128xf32>,
    return
  }
  func.func @transform_0(%arg0: i32) -> i32 {
    %c0_i32 = arith.constant 0 : i32
    %c0_i32_0 = arith.constant 0 : i32
    return %c0_i32 : i32
  }
  func.func @transform_1(%arg0: i32) -> (i32, i32, i32) {
    %c0_i32 = arith.constant 0 : i32
    %c0_i32_0 = arith.constant 0 : i32
    %c0_i32_1 = arith.constant 0 : i32
    return %arg0, %c0_i32, %c0_i32_0 : i32, i32, i32
  }
  func.func @transform_2(%arg0: i32) -> (i32, i32, i32) {
    %c0_i32 = arith.constant 0 : i32
    %c0_i32_0 = arith.constant 0 : i32
    %c0_i32_1 = arith.constant 0 : i32
    return %arg0, %c0_i32, %c0_i32_0 : i32, i32, i32
  }
  func.func @transform_3(%arg0: i32) -> (i32, i32) {
    %c0_i32 = arith.constant 0 : i32
    %c0_i32_0 = arith.constant 0 : i32
    %c0_i32_1 = arith.constant 0 : i32
    return %c0_i32, %c0_i32_0 : i32, i32
  }
  func.func @transform_4(%arg0: i32) -> (i32, i32, i32) {
    %c0_i32 = arith.constant 0 : i32
    %c0_i32_0 = arith.constant 0 : i32
    %c0_i32_1 = arith.constant 0 : i32
    return %arg0, %c0_i32, %c0_i32_0 : i32, i32, i32
  }
}

</mosaic_0001>

<llo_original>
// kernel: helper_model_forward.1
$region0: #{helper_model_forward.1}
  #allocation0 [shape = 'u32[]', space=smem, size = 0x4, offset = 0x4, fixed_abs, tag = 'smem constant byte address 0x4 - core index']
  #allocation1 [shape = 'u32[144,128]{1,0:T(1,128)}', space=vmem, size = 0x12000, scoped, tag = 'internal scratch']
  %s0 = inlined_call_operand.vmem [shape: f32[32], index: 0, kind: input, shape index: {}]
  %s1 = inlined_call_operand.vmem [shape: f32[2,4,256], index: 1, kind: input, shape index: {}]
  %s2 = inlined_call_operand.vmem [shape: f32[2,4,128], index: 2, kind: input, shape index: {}]
  %s3 = inlined_call_operand.vmem [shape: f32[32,128], index: 3, kind: input, shape index: {}]
  %s4 = inlined_call_operand.hbm [shape: f32[1,2,128], index: 4, kind: output, shape index: {}]
  %s5 = sld [smem:[#allocation0]]
  $region30: #{helper_model_forward.1} parent=0
    _
  %s7 = ssub.s32 1, %s5
  %s8 = scalar_select 0, %s7, %s5
  $region1: #{helper_model_forward.1} parent=0
    #allocation2 [shape = 'u8[512]{0}', space=smem, size = 0x200, scoped, tag = 'input window, operand 0, single buffered']
    #allocation3 [shape = 's32[1]{0}', space=sflag, size = 0x4, scoped, tag = 'scoped memory for helper_model_forward.1']
    #allocation4 [shape = 's32[1]{0}', space=sflag, size = 0x4, scoped, tag = 'scoped memory for helper_model_forward.1']
    #allocation5 [shape = 'u8[1024]{0}', space=vmem, size = 0x400, scoped, tag = 'output window, operand 0, single buffered']
    %9 = vsyncpa [#allocation4], 0
    %10 = vsyncpa [#allocation3], 0
    // Predicated region
    $region2: #{helper_model_forward.1} parent=1 // pred_check
      _
    $region3: #{helper_model_forward.1} parent=1 // pred_check_branch
      %12 = sbr.rel (0) target = $region5
    $region4: #{helper_model_forward.1} parent=1 // pred_region
      %s14 = ssub.s32 16, 16
      %15 = vsyncadd [#allocation4], %s14
      %s17 = sshll.u32 %s0, 4
      %s18 = int_to_ptr.vmem [resolvable:$true] %s17
      %20 = dma.vmem_to_smem %s18, 16, [#allocation2], [#allocation4]
    $region5: #{helper_model_forward.1} parent=1 // pred_fallthru
      _
    // Predicated region
    $region6: #{helper_model_forward.1} parent=1 // pred_check
      _
    $region7: #{helper_model_forward.1} parent=1 // pred_check_branch
      %22 = sbr.rel (0) target = $region9
    $region8: #{helper_model_forward.1} parent=1 // pred_region
      _
    $region9: #{helper_model_forward.1} parent=1 // pred_fallthru
      _
    // Predicated region
    $region10: #{helper_model_forward.1} parent=1 // pred_check
      _
    $region11: #{helper_model_forward.1} parent=1 // pred_check_branch
      %24 = sbr.rel (0) target = $region13
    $region12: #{helper_model_forward.1} parent=1 // pred_region
      _
    $region13: #{helper_model_forward.1} parent=1 // pred_fallthru
      _
    // Predicated region
    $region14: #{helper_model_forward.1} parent=1 // pred_check
      _
    $region15: #{helper_model_forward.1} parent=1 // pred_check_branch
      %26 = sbr.rel (0) target = $region17
    $region16: #{helper_model_forward.1} parent=1 // pred_region
      _
    $region17: #{helper_model_forward.1} parent=1 // pred_fallthru
      _
    // Predicated region
    $region18: #{helper_model_forward.1} parent=1 // pred_check
      _
    $region19: #{helper_model_forward.1} parent=1 // pred_check_branch
      %28 = sbr.rel (0) target = $region21
    $region20: #{helper_model_forward.1} parent=1 // pred_region
      %29 = dma.done [#allocation4], 16
    $region21: #{helper_model_forward.1} parent=1 // pred_fallthru
      _
    %30 = sfence
    %v31 = vld [vmem:[%s3] sm:$0xff]
    %v32 = vld [vmem:[%s3 + $0x8] sm:$0xff]
    %v33 = vld [vmem:[%s3 + $0x10] sm:$0xff]
    %v34 = vld [vmem:[%s3 + $0x18] sm:$0xff]
    %36 = vset.pattern.permute.xlu0 0
    %37 = vperm.xlu0 %36, %v31
    %v38 = vpop.permute.xlu0 %37
    %41 = vset.pattern.permute.xlu0 0
    %42 = vperm.xlu0 %41, %v32
    %v43 = vpop.permute.xlu0 %42
    %46 = vset.pattern.permute.xlu0 0
    %47 = vperm.xlu0 %46, %v33
    %v48 = vpop.permute.xlu0 %47
    %51 = vset.pattern.permute.xlu0 0
    %52 = vperm.xlu0 %51, %v34
    %v53 = vpop.permute.xlu0 %52
    %55 = vset.pattern.permute.xlu0 1
    %56 = vperm.xlu0 %55, %v31
    %v57 = vpop.permute.xlu0 %56
    %59 = vset.pattern.permute.xlu0 1
    %60 = vperm.xlu0 %59, %v32
    %v61 = vpop.permute.xlu0 %60
    %63 = vset.pattern.permute.xlu0 1
    %64 = vperm.xlu0 %63, %v33
    %v65 = vpop.permute.xlu0 %64
    %67 = vset.pattern.permute.xlu0 1
    %68 = vperm.xlu0 %67, %v34
    %v69 = vpop.permute.xlu0 %68
    %71 = vset.pattern.permute.xlu0 2
    %72 = vperm.xlu0 %71, %v31
    %v73 = vpop.permute.xlu0 %72
    %75 = vset.pattern.permute.xlu0 2
    %76 = vperm.xlu0 %75, %v32
    %v77 = vpop.permute.xlu0 %76
    %79 = vset.pattern.permute.xlu0 2
    %80 = vperm.xlu0 %79, %v33
    %v81 = vpop.permute.xlu0 %80
    %83 = vset.pattern.permute.xlu0 2
    %84 = vperm.xlu0 %83, %v34
    %v85 = vpop.permute.xlu0 %84
    %87 = vset.pattern.permute.xlu0 3
    %88 = vperm.xlu0 %87, %v31
    %v89 = vpop.permute.xlu0 %88
    %91 = vset.pattern.permute.xlu0 3
    %92 = vperm.xlu0 %91, %v32
    %v93 = vpop.permute.xlu0 %92
    %95 = vset.pattern.permute.xlu0 3
    %96 = vperm.xlu0 %95, %v33
    %v97 = vpop.permute.xlu0 %96
    %99 = vset.pattern.permute.xlu0 3
    %100 = vperm.xlu0 %99, %v34
    %v101 = vpop.permute.xlu0 %100
    %103 = vset.pattern.permute.xlu0 4
    %104 = vperm.xlu0 %103, %v31
    %v105 = vpop.permute.xlu0 %104
    %107 = vset.pattern.permute.xlu0 4
    %108 = vperm.xlu0 %107, %v32
    %v109 = vpop.permute.xlu0 %108
    %111 = vset.pattern.permute.xlu0 4
    %112 = vperm.xlu0 %111, %v33
    %v113 = vpop.permute.xlu0 %112
    %115 = vset.pattern.permute.xlu0 4
    %116 = vperm.xlu0 %115, %v34
    %v117 = vpop.permute.xlu0 %116
    %119 = vset.pattern.permute.xlu0 5
    %120 = vperm.xlu0 %119, %v31
    %v121 = vpop.permute.xlu0 %120
    %123 = vset.pattern.permute.xlu0 5
    %124 = vperm.xlu0 %123, %v32
    %v125 = vpop.permute.xlu0 %124
    %127 = vset.pattern.permute.xlu0 5
    %128 = vperm.xlu0 %127, %v33
    %v129 = vpop.permute.xlu0 %128
    %131 = vset.pattern.permute.xlu0 5
    %132 = vperm.xlu0 %131, %v34
    %v133 = vpop.permute.xlu0 %132
    %135 = vset.pattern.permute.xlu0 6
    %136 = vperm.xlu0 %135, %v31
    %v137 = vpop.permute.xlu0 %136
    %139 = vset.pattern.permute.xlu0 6
    %140 = vperm.xlu0 %139, %v32
    %v141 = vpop.permute.xlu0 %140
    %143 = vset.pattern.permute.xlu0 6
    %144 = vperm.xlu0 %143, %v33
    %v145 = vpop.permute.xlu0 %144
    %147 = vset.pattern.permute.xlu0 6
    %148 = vperm.xlu0 %147, %v34
    %v149 = vpop.permute.xlu0 %148
    %151 = vset.pattern.permute.xlu0 7
    %152 = vperm.xlu0 %151, %v31
    %v153 = vpop.permute.xlu0 %152
    %155 = vset.pattern.permute.xlu0 7
    %156 = vperm.xlu0 %155, %v32
    %v157 = vpop.permute.xlu0 %156
    %159 = vset.pattern.permute.xlu0 7
    %160 = vperm.xlu0 %159, %v33
    %v161 = vpop.permute.xlu0 %160
    %163 = vset.pattern.permute.xlu0 7
    %164 = vperm.xlu0 %163, %v34
    %v165 = vpop.permute.xlu0 %164
    %167 = vset.pattern.permute.xlu0 8
    %168 = vperm.xlu0 %167, %v31
    %v169 = vpop.permute.xlu0 %168
    %171 = vset.pattern.permute.xlu0 8
    %172 = vperm.xlu0 %171, %v32
    %v173 = vpop.permute.xlu0 %172
    %175 = vset.pattern.permute.xlu0 8
    %176 = vperm.xlu0 %175, %v33
    %v177 = vpop.permute.xlu0 %176
    %179 = vset.pattern.permute.xlu0 8
    %180 = vperm.xlu0 %179, %v34
    %v181 = vpop.permute.xlu0 %180
    %183 = vset.pattern.permute.xlu0 9
    %184 = vperm.xlu0 %183, %v31
    %v185 = vpop.permute.xlu0 %184
    %187 = vset.pattern.permute.xlu0 9
    %188 = vperm.xlu0 %187, %v32
    %v189 = vpop.permute.xlu0 %188
    %191 = vset.pattern.permute.xlu0 9
    %192 = vperm.xlu0 %191, %v33
    %v193 = vpop.permute.xlu0 %192
    %195 = vset.pattern.permute.xlu0 9
    %196 = vperm.xlu0 %195, %v34
    %v197 = vpop.permute.xlu0 %196
    %s199 = smul.u32 0, 32
    %v200 = vld [vmem:[%s1] sm:$0xff]
    %v202 = vlaneseq
    %v203 = vshrl.u32 %v202, 7
    %v204 = vsub.s32 0, %v203
    %v205 = vrot.slane %v200, %v204
    %v206 = vlaneseq
    %v207 = vshrl.u32 %v206, 7
    %v208 = vsub.s32 4, %v207
    %v209 = vrot.slane %v200, %v208
    %v212 = vlaneseq
    %v213 = vshrl.u32 %v212, 7
    %v214 = vsub.s32 0, %v213
    %v215 = vrot.slane %v205, %v214
    %v216 = vlaneseq
    %v217 = vshrl.u32 %v216, 7
    %v218 = vsub.s32 0, %v217
    %v219 = vrot.slane %v209, %v218
    %v220 = vmul.f32 %v38, %v215
    %v221 = vmul.f32 %v38, %v219
    %v222 = vmul.f32 %v43, %v215
    %v223 = vmul.f32 %v43, %v219
    %v224 = vmul.f32 %v48, %v215
    %v225 = vmul.f32 %v48, %v219
    %v226 = vmul.f32 %v53, %v215
    %v227 = vmul.f32 %v53, %v219
    %v228 = vlaneseq
    %v229 = vshrl.u32 %v228, 7
    %v230 = vsub.s32 1, %v229
    %v231 = vrot.slane %v200, %v230
    %v232 = vlaneseq
    %v233 = vshrl.u32 %v232, 7
    %v234 = vsub.s32 5, %v233
    %v235 = vrot.slane %v200, %v234
    %v238 = vlaneseq
    %v239 = vshrl.u32 %v238, 7
    %v240 = vsub.s32 1, %v239
    %v241 = vrot.slane %v231, %v240
    %v242 = vlaneseq
    %v243 = vshrl.u32 %v242, 7
    %v244 = vsub.s32 1, %v243
    %v245 = vrot.slane %v235, %v244
    %v246 = vmul.f32 %v57, %v241
    %v247 = vmul.f32 %v57, %v245
    %v248 = vmul.f32 %v61, %v241
    %v249 = vmul.f32 %v61, %v245
    %v250 = vmul.f32 %v65, %v241
    %v251 = vmul.f32 %v65, %v245
    %v252 = vmul.f32 %v69, %v241
    %v253 = vmul.f32 %v69, %v245
    %v254 = vadd.f32 %v220, %v246
    %v255 = vadd.f32 %v221, %v247
    %v256 = vadd.f32 %v222, %v248
    %v257 = vadd.f32 %v223, %v249
    %v258 = vadd.f32 %v224, %v250
    %v259 = vadd.f32 %v225, %v251
    %v260 = vadd.f32 %v226, %v252
    %v261 = vadd.f32 %v227, %v253
    %v262 = vlaneseq
    %v263 = vshrl.u32 %v262, 7
    %v264 = vsub.s32 2, %v263
    %v265 = vrot.slane %v200, %v264
    %v266 = vlaneseq
    %v267 = vshrl.u32 %v266, 7
    %v268 = vsub.s32 6, %v267
    %v269 = vrot.slane %v200, %v268
    %v272 = vlaneseq
    %v273 = vshrl.u32 %v272, 7
    %v274 = vsub.s32 2, %v273
    %v275 = vrot.slane %v265, %v274
    %v276 = vlaneseq
    %v277 = vshrl.u32 %v276, 7
    %v278 = vsub.s32 2, %v277
    %v279 = vrot.slane %v269, %v278
    %v280 = vmul.f32 %v73, %v275
    %v281 = vmul.f32 %v73, %v279
    %v282 = vmul.f32 %v77, %v275
    %v283 = vmul.f32 %v77, %v279
    %v284 = vmul.f32 %v81, %v275
    %v285 = vmul.f32 %v81, %v279
    %v286 = vmul.f32 %v85, %v275
    %v287 = vmul.f32 %v85, %v279
    %v288 = vadd.f32 %v254, %v280
    %v289 = vadd.f32 %v255, %v281
    %v290 = vadd.f32 %v256, %v282
    %v291 = vadd.f32 %v257, %v283
    %v292 = vadd.f32 %v258, %v284
    %v293 = vadd.f32 %v259, %v285
    %v294 = vadd.f32 %v260, %v286
    %v295 = vadd.f32 %v261, %v287
    %v296 = vlaneseq
    %v297 = vshrl.u32 %v296, 7
    %v298 = vsub.s32 3, %v297
    %v299 = vrot.slane %v200, %v298
    %v300 = vlaneseq
    %v301 = vshrl.u32 %v300, 7
    %v302 = vsub.s32 7, %v301
    %v303 = vrot.slane %v200, %v302
    %v306 = vlaneseq
    %v307 = vshrl.u32 %v306, 7
    %v308 = vsub.s32 3, %v307
    %v309 = vrot.slane %v299, %v308
    %v310 = vlaneseq
    %v311 = vshrl.u32 %v310, 7
    %v312 = vsub.s32 3, %v311
    %v313 = vrot.slane %v303, %v312
    %v314 = vmul.f32 %v89, %v309
    %v315 = vmul.f32 %v89, %v313
    %v316 = vmul.f32 %v93, %v309
    %v317 = vmul.f32 %v93, %v313
    %v318 = vmul.f32 %v97, %v309
    %v319 = vmul.f32 %v97, %v313
    %v320 = vmul.f32 %v101, %v309
    %v321 = vmul.f32 %v101, %v313
    %v322 = vadd.f32 %v288, %v314
    %v323 = vadd.f32 %v289, %v315
    %v324 = vadd.f32 %v290, %v316
    %v325 = vadd.f32 %v291, %v317
    %v326 = vadd.f32 %v292, %v318
    %v327 = vadd.f32 %v293, %v319
    %v328 = vadd.f32 %v294, %v320
    %v329 = vadd.f32 %v295, %v321
    %v330 = vadd.f32 %v322, %v105
    %v331 = vadd.f32 %v323, %v105
    %v332 = vadd.f32 %v324, %v109
    %v333 = vadd.f32 %v325, %v109
    %v334 = vadd.f32 %v326, %v113
    %v335 = vadd.f32 %v327, %v113
    %v336 = vadd.f32 %v328, %v117
    %v337 = vadd.f32 %v329, %v117
    %v338 = vmax.f32 %v330, 0.0
    %v339 = vmax.f32 %v331, 0.0
    %v340 = vmax.f32 %v332, 0.0
    %v341 = vmax.f32 %v333, 0.0
    %v342 = vmax.f32 %v334, 0.0
    %v343 = vmax.f32 %v335, 0.0
    %v344 = vmax.f32 %v336, 0.0
    %v345 = vmax.f32 %v337, 0.0
    %v346 = vadd.f32 %v338, %v339
    %347 = vadd.xlane.f32.xlu0 %v346
    %v348 = vpop.xlane.xlu0 %347
    %v349 = vadd.f32 %v340, %v341
    %350 = vadd.xlane.f32.xlu0 %v349
    %v351 = vpop.xlane.xlu0 %350
    %v352 = vadd.f32 %v342, %v343
    %353 = vadd.xlane.f32.xlu0 %v352
    %v354 = vpop.xlane.xlu0 %353
    %v355 = vadd.f32 %v344, %v345
    %356 = vadd.xlane.f32.xlu0 %v355
    %v357 = vpop.xlane.xlu0 %356
    %v358 = vmul.f32 %v348, 0.00390625
    %v359 = vmul.f32 %v351, 0.00390625
    %v360 = vmul.f32 %v354, 0.00390625
    %v361 = vmul.f32 %v357, 0.00390625
    %v362 = vld [vmem:[%s2] sm:$0xf]
    %s363 = sadd.s32 %s199, 3
    %s364 = sld [smem:[#allocation2 + %s363]]
    %s365 = sld [smem:[#allocation2 + %s199]]
    %v366 = vstv %s365
    %v367 = vmul.f32 %v366, %v362
    %v368 = vstv %s364
    %v369 = vadd.f32 %v368, %v367
    %s370 = sadd.s32 %s199, 1
    %s371 = sld [smem:[#allocation2 + %s370]]
    %v372 = vstv %s371
    %v373 = vmul.f32 %v372, %v362
    %v375 = vrot.slane %v373, 1
    %v377 = vadd.f32 %v369, %v375
    %s378 = sadd.s32 %s199, 2
    %s379 = sld [smem:[#allocation2 + %s378]]
    %v380 = vstv %s379
    %v381 = vmul.f32 %v380, %v362
    %v383 = vrot.slane %v381, 2
    %v385 = vadd.f32 %v377, %v383
    %s386 = sadd.s32 %s199, 7
    %s387 = sld [smem:[#allocation2 + %s386]]
    %s388 = sadd.s32 %s199, 4
    %s389 = sld [smem:[#allocation2 + %s388]]
    %v390 = vstv %s389
    %v391 = vmul.f32 %v390, %v362
    %v392 = vstv %s387
    %v393 = vadd.f32 %v392, %v391
    %s394 = sadd.s32 %s199, 5
    %s395 = sld [smem:[#allocation2 + %s394]]
    %v396 = vstv %s395
    %v397 = vmul.f32 %v396, %v362
    %v399 = vrot.slane %v397, 1
    %v401 = vadd.f32 %v393, %v399
    %s402 = sadd.s32 %s199, 6
    %s403 = sld [smem:[#allocation2 + %s402]]
    %v404 = vstv %s403
    %v405 = vmul.f32 %v404, %v362
    %v407 = vrot.slane %v405, 2
    %v409 = vadd.f32 %v401, %v407
    %s410 = sadd.s32 %s199, 11
    %s411 = sld [smem:[#allocation2 + %s410]]
    %s412 = sadd.s32 %s199, 8
    %s413 = sld [smem:[#allocation2 + %s412]]
    %v414 = vstv %s413
    %v415 = vmul.f32 %v414, %v362
    %v416 = vstv %s411
    %v417 = vadd.f32 %v416, %v415
    %s418 = sadd.s32 %s199, 9
    %s419 = sld [smem:[#allocation2 + %s418]]
    %v420 = vstv %s419
    %v421 = vmul.f32 %v420, %v362
    %v423 = vrot.slane %v421, 1
    %v425 = vadd.f32 %v417, %v423
    %s426 = sadd.s32 %s199, 10
    %s427 = sld [smem:[#allocation2 + %s426]]
    %v428 = vstv %s427
    %v429 = vmul.f32 %v428, %v362
    %v431 = vrot.slane %v429, 2
    %v433 = vadd.f32 %v425, %v431
    %v434 = vmax.f32 %v433, 1e-05
    %v435 = vrcp.pop %v434
    %v436 = vmul.f32 %v385, %v435
    %v437 = vmul.f32 %v409, %v435
    %vm438 = vcmp.ge.f32.partialorder %v436, 0.0
    %vm439 = vcmp.lt.f32.partialorder %v436, 16.0
    %vm440 = vmand %vm438, %vm439
    %vm441 = vcmp.ge.f32.partialorder %v437, 0.0
    %vm442 = vmand %vm440, %vm441
    %vm443 = vcmp.lt.f32.partialorder %v437, 16.0
    %vm444 = vmand %vm442, %vm443
    %vm445 = vcmp.gt.f32.partialorder %v433, 0.0
    %vm446 = vmand %vm444, %vm445
    %v447 = vlaneseq
    %v448 = vshrl.u32 %v447, 7
    %v449 = vsub.s32 0, %v448
    %v450 = vrot.slane %v362, %v449
    %v451 = vmul.f32 %v121, %v450
    %v452 = vmul.f32 %v125, %v450
    %v453 = vmul.f32 %v129, %v450
    %v454 = vmul.f32 %v133, %v450
    %v455 = vlaneseq
    %v456 = vshrl.u32 %v455, 7
    %v457 = vsub.s32 1, %v456
    %v458 = vrot.slane %v362, %v457
    %v459 = vmul.f32 %v137, %v458
    %v460 = vmul.f32 %v141, %v458
    %v461 = vmul.f32 %v145, %v458
    %v462 = vmul.f32 %v149, %v458
    %v463 = vadd.f32 %v451, %v459
    %v464 = vadd.f32 %v452, %v460
    %v465 = vadd.f32 %v453, %v461
    %v466 = vadd.f32 %v454, %v462
    %v467 = vlaneseq
    %v468 = vshrl.u32 %v467, 7
    %v469 = vsub.s32 2, %v468
    %v470 = vrot.slane %v362, %v469
    %v471 = vmul.f32 %v153, %v470
    %v472 = vmul.f32 %v157, %v470
    %v473 = vmul.f32 %v161, %v470
    %v474 = vmul.f32 %v165, %v470
    %v475 = vadd.f32 %v463, %v471
    %v476 = vadd.f32 %v464, %v472
    %v477 = vadd.f32 %v465, %v473
    %v478 = vadd.f32 %v466, %v474
    %v479 = vlaneseq
    %v480 = vshrl.u32 %v479, 7
    %v481 = vsub.s32 3, %v480
    %v482 = vrot.slane %v362, %v481
    %v483 = vmul.f32 %v169, %v482
    %v484 = vmul.f32 %v173, %v482
    %v485 = vmul.f32 %v177, %v482
    %v486 = vmul.f32 %v181, %v482
    %v487 = vadd.f32 %v475, %v483
    %v488 = vadd.f32 %v476, %v484
    %v489 = vadd.f32 %v477, %v485
    %v490 = vadd.f32 %v478, %v486
    %v491 = vadd.f32 %v487, %v185
    %v492 = vadd.f32 %v488, %v189
    %v493 = vadd.f32 %v489, %v193
    %v494 = vadd.f32 %v490, %v197
    %v495 = vmax.f32 %v491, 0.0
    %v496 = vmax.f32 %v492, 0.0
    %v497 = vmax.f32 %v493, 0.0
    %v498 = vmax.f32 %v494, 0.0
    %v499 = vsel %vm446, 1, 0
    %v500 = vlaneseq
    %v501 = vshrl.u32 %v500, 7
    %v502 = vsub.s32 0, %v501
    %v503 = vrot.slane %v499, %v502
    %vm504 = vcmp.eq.s32.totalorder %v503, 1
    %v505 = vsel %vm504, %v495, 0.0
    %v506 = vsel %vm504, %v496, 0.0
    %v507 = vsel %vm504, %v497, 0.0
    %v508 = vsel %vm504, %v498, 0.0
    %509 = vmax.xlane.f32.xlu0 %v505
    %v510 = vpop.xlane.xlu0 %509
    %511 = vmax.xlane.f32.xlu0 %v506
    %v512 = vpop.xlane.xlu0 %511
    %513 = vmax.xlane.f32.xlu0 %v507
    %v514 = vpop.xlane.xlu0 %513
    %515 = vmax.xlane.f32.xlu0 %v508
    %v516 = vpop.xlane.xlu0 %515
    %v517 = vmul.f32 %v31, %v358
    %v518 = vmul.f32 %v32, %v359
    %v519 = vmul.f32 %v33, %v360
    %v520 = vmul.f32 %v34, %v361
    %vm521 = vcmask 146512
    %v522 = vsel %vm521, %v517, 0.0
    %v523 = vsel %vm521, %v518, 0.0
    %v524 = vadd.f32 %v522, %v523
    %v525 = vsel %vm521, %v519, 0.0
    %v526 = vadd.f32 %v524, %v525
    %v527 = vsel %vm521, %v520, 0.0
    %v528 = vadd.f32 %v526, %v527
    %v529 = vrot.slane %v528, 4
    %v530 = vadd.f32 %v528, %v529
    %v531 = vrot.slane %v530, 2
    %v532 = vadd.f32 %v530, %v531
    %v533 = vrot.slane %v532, 1
    %v534 = vadd.f32 %v532, %v533
    %v535 = vmul.f32 %v31, %v510
    %v536 = vmul.f32 %v32, %v512
    %v537 = vmul.f32 %v33, %v514
    %v538 = vmul.f32 %v34, %v516
    %vm539 = vcmask 212112
    %v540 = vsel %vm539, %v535, 0.0
    %v541 = vsel %vm539, %v536, 0.0
    %v542 = vadd.f32 %v540, %v541
    %v543 = vsel %vm539, %v537, 0.0
    %v544 = vadd.f32 %v542, %v543
    %v545 = vsel %vm539, %v538, 0.0
    %v546 = vadd.f32 %v544, %v545
    %v547 = vrot.slane %v546, 4
    %v548 = vadd.f32 %v546, %v547
    %v549 = vrot.slane %v548, 2
    %v550 = vadd.f32 %v548, %v549
    %v551 = vrot.slane %v550, 1
    %v552 = vadd.f32 %v550, %v551
    %554 = vrot.lane.b32.xlu0 %v552, 120
    %v555 = vpop.permute.xlu0 %554
    %v557 = vadd.f32 %v534, %v555
    %558 = vrot.lane.b32.xlu0 %v31, 112
    %v559 = vpop.permute.xlu0 %558
    %v561 = vadd.f32 %v557, %v559
    %s562 = smul.u32 0, 2
    %s563 = sadd.s32 %s562, 1
    %s564 = smul.u32 %s563, 16
    %s565 = scalar_lea.vmem %s1, 8
    %v566 = vld [vmem:[%s565] sm:$0xff]
    %v568 = vlaneseq
    %v569 = vshrl.u32 %v568, 7
    %v570 = vsub.s32 0, %v569
    %v571 = vrot.slane %v566, %v570
    %v572 = vlaneseq
    %v573 = vshrl.u32 %v572, 7
    %v574 = vsub.s32 4, %v573
    %v575 = vrot.slane %v566, %v574
    %v578 = vlaneseq
    %v579 = vshrl.u32 %v578, 7
    %v580 = vsub.s32 0, %v579
    %v581 = vrot.slane %v571, %v580
    %v582 = vlaneseq
    %v583 = vshrl.u32 %v582, 7
    %v584 = vsub.s32 0, %v583
    %v585 = vrot.slane %v575, %v584
    %v586 = vmul.f32 %v38, %v581
    %v587 = vmul.f32 %v38, %v585
    %v588 = vmul.f32 %v43, %v581
    %v589 = vmul.f32 %v43, %v585
    %v590 = vmul.f32 %v48, %v581
    %v591 = vmul.f32 %v48, %v585
    %v592 = vmul.f32 %v53, %v581
    %v593 = vmul.f32 %v53, %v585
    %v594 = vlaneseq
    %v595 = vshrl.u32 %v594, 7
    %v596 = vsub.s32 1, %v595
    %v597 = vrot.slane %v566, %v596
    %v598 = vlaneseq
    %v599 = vshrl.u32 %v598, 7
    %v600 = vsub.s32 5, %v599
    %v601 = vrot.slane %v566, %v600
    %v604 = vlaneseq
    %v605 = vshrl.u32 %v604, 7
    %v606 = vsub.s32 1, %v605
    %v607 = vrot.slane %v597, %v606
    %v608 = vlaneseq
    %v609 = vshrl.u32 %v608, 7
    %v610 = vsub.s32 1, %v609
    %v611 = vrot.slane %v601, %v610
    %v612 = vmul.f32 %v57, %v607
    %v613 = vmul.f32 %v57, %v611
    %v614 = vmul.f32 %v61, %v607
    %v615 = vmul.f32 %v61, %v611
    %v616 = vmul.f32 %v65, %v607
    %v617 = vmul.f32 %v65, %v611
    %v618 = vmul.f32 %v69, %v607
    %v619 = vmul.f32 %v69, %v611
    %v620 = vadd.f32 %v586, %v612
    %v621 = vadd.f32 %v587, %v613
    %v622 = vadd.f32 %v588, %v614
    %v623 = vadd.f32 %v589, %v615
    %v624 = vadd.f32 %v590, %v616
    %v625 = vadd.f32 %v591, %v617
    %v626 = vadd.f32 %v592, %v618
    %v627 = vadd.f32 %v593, %v619
    %v628 = vlaneseq
    %v629 = vshrl.u32 %v628, 7
    %v630 = vsub.s32 2, %v629
    %v631 = vrot.slane %v566, %v630
    %v632 = vlaneseq
    %v633 = vshrl.u32 %v632, 7
    %v634 = vsub.s32 6, %v633
    %v635 = vrot.slane %v566, %v634
    %v638 = vlaneseq
    %v639 = vshrl.u32 %v638, 7
    %v640 = vsub.s32 2, %v639
    %v641 = vrot.slane %v631, %v640
    %v642 = vlaneseq
    %v643 = vshrl.u32 %v642, 7
    %v644 = vsub.s32 2, %v643
    %v645 = vrot.slane %v635, %v644
    %v646 = vmul.f32 %v73, %v641
    %v647 = vmul.f32 %v73, %v645
    %v648 = vmul.f32 %v77, %v641
    %v649 = vmul.f32 %v77, %v645
    %v650 = vmul.f32 %v81, %v641
    %v651 = vmul.f32 %v81, %v645
    %v652 = vmul.f32 %v85, %v641
    %v653 = vmul.f32 %v85, %v645
    %v654 = vadd.f32 %v620, %v646
    %v655 = vadd.f32 %v621, %v647
    %v656 = vadd.f32 %v622, %v648
    %v657 = vadd.f32 %v623, %v649
    %v658 = vadd.f32 %v624, %v650
    %v659 = vadd.f32 %v625, %v651
    %v660 = vadd.f32 %v626, %v652
    %v661 = vadd.f32 %v627, %v653
    %v662 = vlaneseq
    %v663 = vshrl.u32 %v662, 7
    %v664 = vsub.s32 3, %v663
    %v665 = vrot.slane %v566, %v664
    %v666 = vlaneseq
    %v667 = vshrl.u32 %v666, 7
    %v668 = vsub.s32 7, %v667
    %v669 = vrot.slane %v566, %v668
    %v672 = vlaneseq
    %v673 = vshrl.u32 %v672, 7
    %v674 = vsub.s32 3, %v673
    %v675 = vrot.slane %v665, %v674
    %v676 = vlaneseq
    %v677 = vshrl.u32 %v676, 7
    %v678 = vsub.s32 3, %v677
    %v679 = vrot.slane %v669, %v678
    %v680 = vmul.f32 %v89, %v675
    %v681 = vmul.f32 %v89, %v679
    %v682 = vmul.f32 %v93, %v675
    %v683 = vmul.f32 %v93, %v679
    %v684 = vmul.f32 %v97, %v675
    %v685 = vmul.f32 %v97, %v679
    %v686 = vmul.f32 %v101, %v675
    %v687 = vmul.f32 %v101, %v679
    %v688 = vadd.f32 %v654, %v680
    %v689 = vadd.f32 %v655, %v681
    %v690 = vadd.f32 %v656, %v682
    %v691 = vadd.f32 %v657, %v683
    %v692 = vadd.f32 %v658, %v684
    %v693 = vadd.f32 %v659, %v685
    %v694 = vadd.f32 %v660, %v686
    %v695 = vadd.f32 %v661, %v687
    %v696 = vadd.f32 %v688, %v105
    %v697 = vadd.f32 %v689, %v105
    %v698 = vadd.f32 %v690, %v109
    %v699 = vadd.f32 %v691, %v109
    %v700 = vadd.f32 %v692, %v113
    %v701 = vadd.f32 %v693, %v113
    %v702 = vadd.f32 %v694, %v117
    %v703 = vadd.f32 %v695, %v117
    %v704 = vmax.f32 %v696, 0.0
    %v705 = vmax.f32 %v697, 0.0
    %v706 = vmax.f32 %v698, 0.0
    %v707 = vmax.f32 %v699, 0.0
    %v708 = vmax.f32 %v700, 0.0
    %v709 = vmax.f32 %v701, 0.0
    %v710 = vmax.f32 %v702, 0.0
    %v711 = vmax.f32 %v703, 0.0
    %v712 = vadd.f32 %v704, %v705
    %713 = vadd.xlane.f32.xlu0 %v712
    %v714 = vpop.xlane.xlu0 %713
    %v715 = vadd.f32 %v706, %v707
    %716 = vadd.xlane.f32.xlu0 %v715
    %v717 = vpop.xlane.xlu0 %716
    %v718 = vadd.f32 %v708, %v709
    %719 = vadd.xlane.f32.xlu0 %v718
    %v720 = vpop.xlane.xlu0 %719
    %v721 = vadd.f32 %v710, %v711
    %722 = vadd.xlane.f32.xlu0 %v721
    %v723 = vpop.xlane.xlu0 %722
    %v724 = vmul.f32 %v714, 0.00390625
    %v725 = vmul.f32 %v717, 0.00390625
    %v726 = vmul.f32 %v720, 0.00390625
    %v727 = vmul.f32 %v723, 0.00390625
    %s728 = scalar_lea.vmem %s2, 4
    %v729 = vld [vmem:[%s728] sm:$0xf]
    %s730 = sadd.s32 %s564, 3
    %s731 = sld [smem:[#allocation2 + %s730]]
    %s732 = sld [smem:[#allocation2 + %s564]]
    %v733 = vstv %s732
    %v734 = vmul.f32 %v733, %v729
    %v735 = vstv %s731
    %v736 = vadd.f32 %v735, %v734
    %s737 = sadd.s32 %s564, 1
    %s738 = sld [smem:[#allocation2 + %s737]]
    %v739 = vstv %s738
    %v740 = vmul.f32 %v739, %v729
    %v742 = vrot.slane %v740, 1
    %v744 = vadd.f32 %v736, %v742
    %s745 = sadd.s32 %s564, 2
    %s746 = sld [smem:[#allocation2 + %s745]]
    %v747 = vstv %s746
    %v748 = vmul.f32 %v747, %v729
    %v750 = vrot.slane %v748, 2
    %v752 = vadd.f32 %v744, %v750
    %s753 = sadd.s32 %s564, 7
    %s754 = sld [smem:[#allocation2 + %s753]]
    %s755 = sadd.s32 %s564, 4
    %s756 = sld [smem:[#allocation2 + %s755]]
    %v757 = vstv %s756
    %v758 = vmul.f32 %v757, %v729
    %v759 = vstv %s754
    %v760 = vadd.f32 %v759, %v758
    %s761 = sadd.s32 %s564, 5
    %s762 = sld [smem:[#allocation2 + %s761]]
    %v763 = vstv %s762
    %v764 = vmul.f32 %v763, %v729
    %v766 = vrot.slane %v764, 1
    %v768 = vadd.f32 %v760, %v766
    %s769 = sadd.s32 %s564, 6
    %s770 = sld [smem:[#allocation2 + %s769]]
    %v771 = vstv %s770
    %v772 = vmul.f32 %v771, %v729
    %v774 = vrot.slane %v772, 2
    %v776 = vadd.f32 %v768, %v774
    %s777 = sadd.s32 %s564, 11
    %s778 = sld [smem:[#allocation2 + %s777]]
    %s779 = sadd.s32 %s564, 8
    %s780 = sld [smem:[#allocation2 + %s779]]
    %v781 = vstv %s780
    %v782 = vmul.f32 %v781, %v729
    %v783 = vstv %s778
    %v784 = vadd.f32 %v783, %v782
    %s785 = sadd.s32 %s564, 9
    %s786 = sld [smem:[#allocation2 + %s785]]
    %v787 = vstv %s786
    %v788 = vmul.f32 %v787, %v729
    %v790 = vrot.slane %v788, 1
    %v792 = vadd.f32 %v784, %v790
    %s793 = sadd.s32 %s564, 10
    %s794 = sld [smem:[#allocation2 + %s793]]
    %v795 = vstv %s794
    %v796 = vmul.f32 %v795, %v729
    %v798 = vrot.slane %v796, 2
    %v800 = vadd.f32 %v792, %v798
    %v801 = vmax.f32 %v800, 1e-05
    %v802 = vrcp.pop %v801
    %v803 = vmul.f32 %v752, %v802
    %v804 = vmul.f32 %v776, %v802
    %vm805 = vcmp.ge.f32.partialorder %v803, 0.0
    %vm806 = vcmp.lt.f32.partialorder %v803, 16.0
    %vm807 = vmand %vm805, %vm806
    %vm808 = vcmp.ge.f32.partialorder %v804, 0.0
    %vm809 = vmand %vm807, %vm808
    %vm810 = vcmp.lt.f32.partialorder %v804, 16.0
    %vm811 = vmand %vm809, %vm810
    %vm812 = vcmp.gt.f32.partialorder %v800, 0.0
    %vm813 = vmand %vm811, %vm812
    %v814 = vlaneseq
    %v815 = vshrl.u32 %v814, 7
    %v816 = vsub.s32 0, %v815
    %v817 = vrot.slane %v729, %v816
    %v818 = vmul.f32 %v121, %v817
    %v819 = vmul.f32 %v125, %v817
    %v820 = vmul.f32 %v129, %v817
    %v821 = vmul.f32 %v133, %v817
    %v822 = vlaneseq
    %v823 = vshrl.u32 %v822, 7
    %v824 = vsub.s32 1, %v823
    %v825 = vrot.slane %v729, %v824
    %v826 = vmul.f32 %v137, %v825
    %v827 = vmul.f32 %v141, %v825
    %v828 = vmul.f32 %v145, %v825
    %v829 = vmul.f32 %v149, %v825
    %v830 = vadd.f32 %v818, %v826
    %v831 = vadd.f32 %v819, %v827
    %v832 = vadd.f32 %v820, %v828
    %v833 = vadd.f32 %v821, %v829
    %v834 = vlaneseq
    %v835 = vshrl.u32 %v834, 7
    %v836 = vsub.s32 2, %v835
    %v837 = vrot.slane %v729, %v836
    %v838 = vmul.f32 %v153, %v837
    %v839 = vmul.f32 %v157, %v837
    %v840 = vmul.f32 %v161, %v837
    %v841 = vmul.f32 %v165, %v837
    %v842 = vadd.f32 %v830, %v838
    %v843 = vadd.f32 %v831, %v839
    %v844 = vadd.f32 %v832, %v840
    %v845 = vadd.f32 %v833, %v841
    %v846 = vlaneseq
    %v847 = vshrl.u32 %v846, 7
    %v848 = vsub.s32 3, %v847
    %v849 = vrot.slane %v729, %v848
    %v850 = vmul.f32 %v169, %v849
    %v851 = vmul.f32 %v173, %v849
    %v852 = vmul.f32 %v177, %v849
    %v853 = vmul.f32 %v181, %v849
    %v854 = vadd.f32 %v842, %v850
    %v855 = vadd.f32 %v843, %v851
    %v856 = vadd.f32 %v844, %v852
    %v857 = vadd.f32 %v845, %v853
    %v858 = vadd.f32 %v854, %v185
    %v859 = vadd.f32 %v855, %v189
    %v860 = vadd.f32 %v856, %v193
    %v861 = vadd.f32 %v857, %v197
    %v862 = vmax.f32 %v858, 0.0
    %v863 = vmax.f32 %v859, 0.0
    %v864 = vmax.f32 %v860, 0.0
    %v865 = vmax.f32 %v861, 0.0
    %v866 = vsel %vm813, 1, 0
    %v867 = vlaneseq
    %v868 = vshrl.u32 %v867, 7
    %v869 = vsub.s32 0, %v868
    %v870 = vrot.slane %v866, %v869
    %vm871 = vcmp.eq.s32.totalorder %v870, 1
    %v872 = vsel %vm871, %v862, 0.0
    %v873 = vsel %vm871, %v863, 0.0
    %v874 = vsel %vm871, %v864, 0.0
    %v875 = vsel %vm871, %v865, 0.0
    %876 = vmax.xlane.f32.xlu0 %v872
    %v877 = vpop.xlane.xlu0 %876
    %878 = vmax.xlane.f32.xlu0 %v873
    %v879 = vpop.xlane.xlu0 %878
    %880 = vmax.xlane.f32.xlu0 %v874
    %v881 = vpop.xlane.xlu0 %880
    %882 = vmax.xlane.f32.xlu0 %v875
    %v883 = vpop.xlane.xlu0 %882
    %v884 = vmul.f32 %v31, %v724
    %v885 = vmul.f32 %v32, %v725
    %v886 = vmul.f32 %v33, %v726
    %v887 = vmul.f32 %v34, %v727
    %v888 = vsel %vm521, %v884, 0.0
    %v889 = vsel %vm521, %v885, 0.0
    %v890 = vadd.f32 %v888, %v889
    %v891 = vsel %vm521, %v886, 0.0
    %v892 = vadd.f32 %v890, %v891
    %v893 = vsel %vm521, %v887, 0.0
    %v894 = vadd.f32 %v892, %v893
    %v895 = vrot.slane %v894, 4
    %v896 = vadd.f32 %v894, %v895
    %v897 = vrot.slane %v896, 2
    %v898 = vadd.f32 %v896, %v897
    %v899 = vrot.slane %v898, 1
    %v900 = vadd.f32 %v898, %v899
    %v901 = vmul.f32 %v31, %v877
    %v902 = vmul.f32 %v32, %v879
    %v903 = vmul.f32 %v33, %v881
    %v904 = vmul.f32 %v34, %v883
    %v905 = vsel %vm539, %v901, 0.0
    %v906 = vsel %vm539, %v902, 0.0
    %v907 = vadd.f32 %v905, %v906
    %v908 = vsel %vm539, %v903, 0.0
    %v909 = vadd.f32 %v907, %v908
    %v910 = vsel %vm539, %v904, 0.0
    %v911 = vadd.f32 %v909, %v910
    %v912 = vrot.slane %v911, 4
    %v913 = vadd.f32 %v911, %v912
    %v914 = vrot.slane %v913, 2
    %v915 = vadd.f32 %v913, %v914
    %v916 = vrot.slane %v915, 1
    %v917 = vadd.f32 %v915, %v916
    %919 = vrot.lane.b32.xlu0 %v917, 120
    %v920 = vpop.permute.xlu0 %919
    %v922 = vadd.f32 %v900, %v920
    %v923 = vadd.f32 %v922, %v559
    %v925 = vrot.slane %v923, 7
    %vm927 = vcmask 1040384
    %v928 = vsel %vm927, %v561, %v925
    %930 = vrot.lane.b32.xlu0 %v928, 118
    %v931 = vpop.permute.xlu0 %930
    %vm933 = vcmask 64512
    %v934 = vsel %vm933, %v931, 0.0
    %935 = vst [vmem:[#allocation5] sm:$0x3] %v934
    // Predicated region
    $region22: #{helper_model_forward.1} parent=1 // pred_check
      _
    $region23: #{helper_model_forward.1} parent=1 // pred_check_branch
      %937 = sbr.rel (0) target = $region25
    $region24: #{helper_model_forward.1} parent=1 // pred_region
      %s939 = ssub.s32 32, 32
      %940 = vsyncadd [#allocation3], %s939
      %s942 = sshll.u32 [#allocation5], 4
      %s943 = int_to_ptr.vmem [resolvable:$true] %s942
      %945 = dma.vmem_to_hbm [thread:$0]  %s943, 32, %s4, [#allocation3]
    $region25: #{helper_model_forward.1} parent=1 // pred_fallthru
      _
    // Predicated region
    $region26: #{helper_model_forward.1} parent=1 // pred_check
      _
    $region27: #{helper_model_forward.1} parent=1 // pred_check_branch
      %947 = sbr.rel (0) target = $region29
    $region28: #{helper_model_forward.1} parent=1 // pred_region
      %948 = dma.done [#allocation3], 32
    $region29: #{helper_model_forward.1} parent=1 // pred_fallthru
      _
    %949 = vsyncpa [#allocation3], 1
    %950 = vsyncpa [#allocation4], 1

</llo_original>
